<compile_context>
chip_gen: v5e
topology: v5e:2x2
jax: 0.10.0
libtpu: 0.0.40
codegen_flags: <defaults>
</compile_context>

<pallas_src>
import functools

import jax
import jax.numpy as jnp
from jax import lax
from jax.experimental import pallas as pl
from jax.experimental.pallas import tpu as pltpu


def _bt_kernel(x_ref, w_ih_ref, w_hh_ref, b_ref, lin_w_ref, lin_b_ref,
               out1_ref, out2_ref, *, num_layers, T, Bp, H):
    # x_ref    : (T*Bp, H)  f32, time-major, batch padded to Bp (multiple of 8)
    # w_ih_ref : (L, H, 4H) bf16   -- gates concatenated along the lane axis
    # w_hh_ref : (L, H, 4H) bf16
    # b_ref    : (L, 1, 4H) f32    -- bias_ih + bias_hh, gate-concatenated
    # lin_w_ref: (H, H) bf16       lin_b_ref: (1, H) f32
    # out1_ref, out2_ref: (T*Bp, H) f32
    G = 4 * H

    seq = x_ref[...]                                    # (T*Bp, H) f32, SSA

    for layer in range(num_layers):                     # static unroll (L small)
        seq_b = seq.astype(jnp.bfloat16)

        # --- Hoisted input projection: ONE lane-dense matmul per layer,
        #     bias fused here so the serial path carries no bias add.
        xp = (jnp.dot(seq_b, w_ih_ref[layer],
                      preferred_element_type=jnp.float32)
              + b_ref[layer])                           # (T*Bp, 4H) f32, SSA

        w_hh = w_hh_ref[layer]                          # (H, 4H) bf16, hoisted

        h = jnp.zeros((Bp, H), jnp.float32)
        c = jnp.zeros((Bp, H), jnp.float32)
        hs = []

        # Fully unrolled time loop (T static & small): every slice index is a
        # static, sublane-aligned constant (Bp == 8), so no per-step scalar work.
        for t in range(T):
            row = t * Bp
            # ONE recurrent matmul per step, result fills 4H = 128+ lanes.
            gates = xp[row:row + Bp, :] + jnp.dot(
                h.astype(jnp.bfloat16), w_hh,
                preferred_element_type=jnp.float32)     # (Bp, 4H) f32
            # Nonlinearities on the full lane-dense vreg, then static lane
            # slices for the individual gates (order: i, f, g, o).
            sig = jax.nn.sigmoid(gates)
            th = jnp.tanh(gates)
            i_g = sig[:, 0 * H:1 * H]
            f_g = sig[:, 1 * H:2 * H]
            g_g = th[:, 2 * H:3 * H]
            o_g = sig[:, 3 * H:4 * H]
            c = f_g * c + i_g * g_g
            h = o_g * jnp.tanh(c)
            hs.append(h)

        # Next layer's input stays in registers/SSA -- no scratch round trip.
        seq = jnp.concatenate(hs, axis=0)               # (T*Bp, H) f32

    # Post-LSTM ReLU; single full-slab store (no per-step masked stores).
    out1 = jnp.maximum(seq, 0.0)
    out1_ref[...] = out1

    # Linear -> ReLU -> Dropout (identity in eval) -> output_2.
    y = (jnp.dot(out1.astype(jnp.bfloat16), lin_w_ref[...],
                 preferred_element_type=jnp.float32)
         + lin_b_ref[...])
    out2_ref[...] = jnp.maximum(y, 0.0)


@functools.partial(jax.jit, static_argnames=("num_layers",))
def bt_network_forward(x, params, num_layers):
    """x: (B, T, H) batch_first float32. Returns [output_1, output_2], (B,T,H)."""
    B, T, H = x.shape
    L = num_layers
    Bp = max(8, (B + 7) // 8 * 8)                       # pad batch to sublane multiple

    # time-major, batch-padded, flattened to a layout-stable 2D slab
    # TODO(synk): at realistic B/T/H absorb this layout plumbing into the kernel
    # (or accept time-major I/O) to avoid the extra XLA transpose passes.
    x_t = jnp.transpose(x, (1, 0, 2)).astype(jnp.float32)        # (T, B, H)
    x_p = jnp.pad(x_t, ((0, 0), (0, Bp - B), (0, 0)))            # (T, Bp, H)
    x2 = x_p.reshape(T * Bp, H)                                  # (T*Bp, H)

    # Repack gate-leading (L, 4, H, H) weights into gate-concatenated (L, H, 4H)
    # so both the hoisted projection and the recurrent step are single matmuls.
    w_ih = jnp.transpose(params["w_ih"], (0, 2, 1, 3)).reshape(L, H, 4 * H)
    w_hh = jnp.transpose(params["w_hh"], (0, 2, 1, 3)).reshape(L, H, 4 * H)
    b = jnp.transpose(params["b"], (0, 2, 1, 3)).reshape(L, 1, 4 * H)

    # bf16 matmul operands (f32 accumulation inside the kernel).
    w_ih = w_ih.astype(jnp.bfloat16)
    w_hh = w_hh.astype(jnp.bfloat16)
    lin_w = params["lin_w"].astype(jnp.bfloat16)
    b = b.astype(jnp.float32)
    lin_b = params["lin_b"].astype(jnp.float32)

    kernel = functools.partial(_bt_kernel, num_layers=num_layers, T=T, Bp=Bp, H=H)
    vmem = pl.BlockSpec(memory_space=pltpu.MemorySpace.VMEM)

    out1, out2 = pl.pallas_call(
        kernel,
        out_shape=(jax.ShapeDtypeStruct((T * Bp, H), jnp.float32),
                   jax.ShapeDtypeStruct((T * Bp, H), jnp.float32)),
        in_specs=[vmem] * 6,
        out_specs=(vmem, vmem),
    )(x2, w_ih, w_hh, b, lin_w, lin_b)

    def unflat(o):  # (T*Bp, H) -> (B, T, H), drop batch padding
        return jnp.transpose(o.reshape(T, Bp, H)[:, :B, :], (1, 0, 2))

    return [unflat(out1), unflat(out2)]


def init_params(key, hidden_dim, num_layers):
    """Deterministic synthetic parameters (same shapes as the torch module).

    Gate order i, f, g, o (torch convention):
      w_ih[l, k] = weight_ih_l{l}[k*H:(k+1)*H, :].T   (H, H)
      w_hh[l, k] = weight_hh_l{l}[k*H:(k+1)*H, :].T   (H, H)
      b[l, k, 0] = bias_ih_l{l}[kH:(k+1)H] + bias_hh_l{l}[kH:(k+1)H]
      lin_w      = linear_1.weight.T                   (H, H)
      lin_b      = linear_1.bias                       (1, H)
    """
    H = hidden_dim
    ks = jax.random.split(key, 5)
    scale = 1.0 / jnp.sqrt(H)
    w_ih = jax.random.uniform(ks[0], (num_layers, 4, H, H),
                              minval=-scale, maxval=scale, dtype=jnp.float32)
    w_hh = jax.random.uniform(ks[1], (num_layers, 4, H, H),
                              minval=-scale, maxval=scale, dtype=jnp.float32)
    b = jax.random.uniform(ks[2], (num_layers, 4, 1, H),
                           minval=-scale, maxval=scale, dtype=jnp.float32)
    lin_w = jax.random.uniform(ks[3], (H, H),
                               minval=-scale, maxval=scale, dtype=jnp.float32)
    lin_b = jax.random.uniform(ks[4], (1, H),
                               minval=-scale, maxval=scale, dtype=jnp.float32)
    return {"w_ih": w_ih, "w_hh": w_hh, "b": b, "lin_w": lin_w, "lin_b": lin_b}


def _reference_forward(x, params, num_layers):
    """Pure-JAX f32 reference (mirrors torch semantics) for correctness check."""
    B, T, H = x.shape
    seq = x.astype(jnp.float32)
    for l in range(num_layers):
        w_ih = params["w_ih"][l]      # (4, H, H)
        w_hh = params["w_hh"][l]      # (4, H, H)
        b = params["b"][l]            # (4, 1, H)

        def step(carry, x_t):
            h, c = carry
            gi = x_t @ w_ih[0] + h @ w_hh[0] + b[0]
            gf = x_t @ w_ih[1] + h @ w_hh[1] + b[1]
            gg = x_t @ w_ih[2] + h @ w_hh[2] + b[2]
            go = x_t @ w_ih[3] + h @ w_hh[3] + b[3]
            i_g = jax.nn.sigmoid(gi)
            f_g = jax.nn.sigmoid(gf)
            g_g = jnp.tanh(gg)
            o_g = jax.nn.sigmoid(go)
            c = f_g * c + i_g * g_g
            h = o_g * jnp.tanh(c)
            return (h, c), h

        init = (jnp.zeros((B, H), jnp.float32), jnp.zeros((B, H), jnp.float32))
        _, hs = lax.scan(step, init, jnp.transpose(seq, (1, 0, 2)))
        seq = jnp.transpose(hs, (1, 0, 2))

    out1 = jnp.maximum(seq, 0.0)
    out2 = jnp.maximum(out1 @ params["lin_w"] + params["lin_b"][0], 0.0)
    return [out1, out2]


if __name__ == "__main__":
    B, T, H = 2, 8, 32        # batch, seq_len, hidden_dim
    num_layers = 2

    key = jax.random.PRNGKey(0)
    k_x, k_p = jax.random.split(key)
    x = jax.random.normal(k_x, (B, T, H), dtype=jnp.float32)
    params = init_params(k_p, H, num_layers)

    out1, out2 = bt_network_forward(x, params, num_layers)
    jax.block_until_ready((out1, out2))

    ref1, ref2 = _reference_forward(x, params, num_layers)
    assert out1.shape == (B, T, H) and out2.shape == (B, T, H)
    # bf16 matmul operands (f32 accumulation) vs pure-f32 reference: loose tol.
    # Note: h is cast to bf16 each step for the recurrent matmul; error can
    # grow with T -- validated here at T=8.
    assert jnp.allclose(out1, ref1, atol=5e-2, rtol=5e-2), \
        float(jnp.max(jnp.abs(out1 - ref1)))
    assert jnp.allclose(out2, ref2, atol=5e-2, rtol=5e-2), \
        float(jnp.max(jnp.abs(out2 - ref2)))

    print("KERNEL_OK")
</pallas_src>

<mosaic_0001>
module attributes {stable_mosaic.version = 11 : i64} {
  func.func @_bt_kernel(%arg0: memref<64x32xf32, #tpu.memory_space<vmem>>, %arg1: memref<2x32x128xbf16, #tpu.memory_space<vmem>>, %arg2: memref<2x32x128xbf16, #tpu.memory_space<vmem>>, %arg3: memref<2x1x128xf32, #tpu.memory_space<vmem>>, %arg4: memref<32x32xbf16, #tpu.memory_space<vmem>>, %arg5: memref<1x32xf32, #tpu.memory_space<vmem>>, %arg6: memref<64x32xf32, #tpu.memory_space<vmem>>, %arg7: memref<64x32xf32, #tpu.memory_space<vmem>>) attributes {dimension_semantics = [], scalar_prefetch = 0 : i64, scratch_operands = 0 : i64, tpu.core_type = #tpu.core_type<tc>} {
    %c0 = arith.constant 0 : index
    %c0_0 = arith.constant 0 : index
    %0 = vector.load %arg0[%c0, %c0_0] : memref<64x32xf32, #tpu.memory_space<vmem>>, vector<64x32xf32>
    %1 = arith.truncf %0 : vector<64x32xf32> to vector<64x32xbf16>
    %c0_1 = arith.constant 0 : index
    %c0_2 = arith.constant 0 : index
    %c0_3 = arith.constant 0 : index
    %2 = vector.load %arg1[%c0_1, %c0_2, %c0_3] : memref<2x32x128xbf16, #tpu.memory_space<vmem>>, vector<1x32x128xbf16>
    %3 = vector.shape_cast %2 : vector<1x32x128xbf16> to vector<32x128xbf16>
    %cst = arith.constant dense<0.000000e+00> : vector<64x128xf32>
    %4 = tpu.matmul %1, %3, %cst {dimension_numbers = #tpu.dot_dimension_numbers<[1], [0], [0], [1], [0, 0, 1, 1], [], []>} : vector<64x32xbf16>, vector<32x128xbf16>, vector<64x128xf32> -> vector<64x128xf32>
    %c0_4 = arith.constant 0 : index
    %c0_5 = arith.constant 0 : index
    %c0_6 = arith.constant 0 : index
    %5 = vector.load %arg3[%c0_4, %c0_5, %c0_6] : memref<2x1x128xf32, #tpu.memory_space<vmem>>, vector<1x1x128xf32>
    %6 = vector.shape_cast %5 : vector<1x1x128xf32> to vector<1x128xf32>
    %7 = vector.broadcast %6 : vector<1x128xf32> to vector<64x128xf32>
    %8 = arith.addf %4, %7 : vector<64x128xf32>
    %c0_7 = arith.constant 0 : index
    %c0_8 = arith.constant 0 : index
    %c0_9 = arith.constant 0 : index
    %9 = vector.load %arg2[%c0_7, %c0_8, %c0_9] : memref<2x32x128xbf16, #tpu.memory_space<vmem>>, vector<1x32x128xbf16>
    %10 = vector.shape_cast %9 : vector<1x32x128xbf16> to vector<32x128xbf16>
    %cst_10 = arith.constant 0.000000e+00 : f32
    %11 = vector.broadcast %cst_10 : f32 to vector<8x32xf32>
    %cst_11 = arith.constant 0.000000e+00 : f32
    %12 = vector.broadcast %cst_11 : f32 to vector<8x32xf32>
    %13 = vector.extract_strided_slice %8 {offsets = [0, 0], sizes = [8, 128], strides = [1, 1]} : vector<64x128xf32> to vector<8x128xf32>
    %14 = arith.truncf %11 : vector<8x32xf32> to vector<8x32xbf16>
    %cst_12 = arith.constant dense<0.000000e+00> : vector<8x128xf32>
    %15 = tpu.matmul %14, %10, %cst_12 {dimension_numbers = #tpu.dot_dimension_numbers<[1], [0], [0], [1], [0, 0, 1, 1], [], []>} : vector<8x32xbf16>, vector<32x128xbf16>, vector<8x128xf32> -> vector<8x128xf32>
    %16 = arith.addf %13, %15 : vector<8x128xf32>
    %17 = arith.negf %16 : vector<8x128xf32>
    %18 = math.exp %17 : vector<8x128xf32>
    %cst_13 = arith.constant 1.000000e+00 : f32
    %19 = vector.broadcast %cst_13 : f32 to vector<8x128xf32>
    %20 = arith.addf %19, %18 : vector<8x128xf32>
    %21 = arith.divf %19, %20 : vector<8x128xf32>
    %22 = math.tanh %16 : vector<8x128xf32>
    %23 = vector.extract_strided_slice %21 {offsets = [0, 0], sizes = [8, 32], strides = [1, 1]} : vector<8x128xf32> to vector<8x32xf32>
    %24 = vector.extract_strided_slice %21 {offsets = [0, 32], sizes = [8, 32], strides = [1, 1]} : vector<8x128xf32> to vector<8x32xf32>
    %25 = vector.extract_strided_slice %22 {offsets = [0, 64], sizes = [8, 32], strides = [1, 1]} : vector<8x128xf32> to vector<8x32xf32>
    %26 = vector.extract_strided_slice %21 {offsets = [0, 96], sizes = [8, 32], strides = [1, 1]} : vector<8x128xf32> to vector<8x32xf32>
    %27 = arith.mulf %24, %12 : vector<8x32xf32>
    %28 = arith.mulf %23, %25 : vector<8x32xf32>
    %29 = arith.addf %27, %28 : vector<8x32xf32>
    %30 = math.tanh %29 : vector<8x32xf32>
    %31 = arith.mulf %26, %30 : vector<8x32xf32>
    %32 = vector.extract_strided_slice %8 {offsets = [8, 0], sizes = [8, 128], strides = [1, 1]} : vector<64x128xf32> to vector<8x128xf32>
    %33 = arith.truncf %31 : vector<8x32xf32> to vector<8x32xbf16>
    %cst_14 = arith.constant dense<0.000000e+00> : vector<8x128xf32>
    %34 = tpu.matmul %33, %10, %cst_14 {dimension_numbers = #tpu.dot_dimension_numbers<[1], [0], [0], [1], [0, 0, 1, 1], [], []>} : vector<8x32xbf16>, vector<32x128xbf16>, vector<8x128xf32> -> vector<8x128xf32>
    %35 = arith.addf %32, %34 : vector<8x128xf32>
    %36 = arith.negf %35 : vector<8x128xf32>
    %37 = math.exp %36 : vector<8x128xf32>
    %cst_15 = arith.constant 1.000000e+00 : f32
    %38 = vector.broadcast %cst_15 : f32 to vector<8x128xf32>
    %39 = arith.addf %38, %37 : vector<8x128xf32>
    %40 = arith.divf %38, %39 : vector<8x128xf32>
    %41 = math.tanh %35 : vector<8x128xf32>
    %42 = vector.extract_strided_slice %40 {offsets = [0, 0], sizes = [8, 32], strides = [1, 1]} : vector<8x128xf32> to vector<8x32xf32>
    %43 = vector.extract_strided_slice %40 {offsets = [0, 32], sizes = [8, 32], strides = [1, 1]} : vector<8x128xf32> to vector<8x32xf32>
    %44 = vector.extract_strided_slice %41 {offsets = [0, 64], sizes = [8, 32], strides = [1, 1]} : vector<8x128xf32> to vector<8x32xf32>
    %45 = vector.extract_strided_slice %40 {offsets = [0, 96], sizes = [8, 32], strides = [1, 1]} : vector<8x128xf32> to vector<8x32xf32>
    %46 = arith.mulf %43, %29 : vector<8x32xf32>
    %47 = arith.mulf %42, %44 : vector<8x32xf32>
    %48 = arith.addf %46, %47 : vector<8x32xf32>
    %49 = math.tanh %48 : vector<8x32xf32>
    %50 = arith.mulf %45, %49 : vector<8x32xf32>
    %51 = vector.extract_strided_slice %8 {offsets = [16, 0], sizes = [8, 128], strides = [1, 1]} : vector<64x128xf32> to vector<8x128xf32>
    %52 = arith.truncf %50 : vector<8x32xf32> to vector<8x32xbf16>
    %cst_16 = arith.constant dense<0.000000e+00> : vector<8x128xf32>
    %53 = tpu.matmul %52, %10, %cst_16 {dimension_numbers = #tpu.dot_dimension_numbers<[1], [0], [0], [1], [0, 0, 1, 1], [], []>} : vector<8x32xbf16>, vector<32x128xbf16>, vector<8x128xf32> -> vector<8x128xf32>
    %54 = arith.addf %51, %53 : vector<8x128xf32>
    %55 = arith.negf %54 : vector<8x128xf32>
    %56 = math.exp %55 : vector<8x128xf32>
    %cst_17 = arith.constant 1.000000e+00 : f32
    %57 = vector.broadcast %cst_17 : f32 to vector<8x128xf32>
    %58 = arith.addf %57, %56 : vector<8x128xf32>
    %59 = arith.divf %57, %58 : vector<8x128xf32>
    %60 = math.tanh %54 : vector<8x128xf32>
    %61 = vector.extract_strided_slice %59 {offsets = [0, 0], sizes = [8, 32], strides = [1, 1]} : vector<8x128xf32> to vector<8x32xf32>
    %62 = vector.extract_strided_slice %59 {offsets = [0, 32], sizes = [8, 32], strides = [1, 1]} : vector<8x128xf32> to vector<8x32xf32>
    %63 = vector.extract_strided_slice %60 {offsets = [0, 64], sizes = [8, 32], strides = [1, 1]} : vector<8x128xf32> to vector<8x32xf32>
    %64 = vector.extract_strided_slice %59 {offsets = [0, 96], sizes = [8, 32], strides = [1, 1]} : vector<8x128xf32> to vector<8x32xf32>
    %65 = arith.mulf %62, %48 : vector<8x32xf32>
    %66 = arith.mulf %61, %63 : vector<8x32xf32>
    %67 = arith.addf %65, %66 : vector<8x32xf32>
    %68 = math.tanh %67 : vector<8x32xf32>
    %69 = arith.mulf %64, %68 : vector<8x32xf32>
    %70 = vector.extract_strided_slice %8 {offsets = [24, 0], sizes = [8, 128], strides = [1, 1]} : vector<64x128xf32> to vector<8x128xf32>
    %71 = arith.truncf %69 : vector<8x32xf32> to vector<8x32xbf16>
    %cst_18 = arith.constant dense<0.000000e+00> : vector<8x128xf32>
    %72 = tpu.matmul %71, %10, %cst_18 {dimension_numbers = #tpu.dot_dimension_numbers<[1], [0], [0], [1], [0, 0, 1, 1], [], []>} : vector<8x32xbf16>, vector<32x128xbf16>, vector<8x128xf32> -> vector<8x128xf32>
    %73 = arith.addf %70, %72 : vector<8x128xf32>
    %74 = arith.negf %73 : vector<8x128xf32>
    %75 = math.exp %74 : vector<8x128xf32>
    %cst_19 = arith.constant 1.000000e+00 : f32
    %76 = vector.broadcast %cst_19 : f32 to vector<8x128xf32>
    %77 = arith.addf %76, %75 : vector<8x128xf32>
    %78 = arith.divf %76, %77 : vector<8x128xf32>
    %79 = math.tanh %73 : vector<8x128xf32>
    %80 = vector.extract_strided_slice %78 {offsets = [0, 0], sizes = [8, 32], strides = [1, 1]} : vector<8x128xf32> to vector<8x32xf32>
    %81 = vector.extract_strided_slice %78 {offsets = [0, 32], sizes = [8, 32], strides = [1, 1]} : vector<8x128xf32> to vector<8x32xf32>
    %82 = vector.extract_strided_slice %79 {offsets = [0, 64], sizes = [8, 32], strides = [1, 1]} : vector<8x128xf32> to vector<8x32xf32>
    %83 = vector.extract_strided_slice %78 {offsets = [0, 96], sizes = [8, 32], strides = [1, 1]} : vector<8x128xf32> to vector<8x32xf32>
    %84 = arith.mulf %81, %67 : vector<8x32xf32>
    %85 = arith.mulf %80, %82 : vector<8x32xf32>
    %86 = arith.addf %84, %85 : vector<8x32xf32>
    %87 = math.tanh %86 : vector<8x32xf32>
    %88 = arith.mulf %83, %87 : vector<8x32xf32>
    %89 = vector.extract_strided_slice %8 {offsets = [32, 0], sizes = [8, 128], strides = [1, 1]} : vector<64x128xf32> to vector<8x128xf32>
    %90 = arith.truncf %88 : vector<8x32xf32> to vector<8x32xbf16>
    %cst_20 = arith.constant dense<0.000000e+00> : vector<8x128xf32>
    %91 = tpu.matmul %90, %10, %cst_20 {dimension_numbers = #tpu.dot_dimension_numbers<[1], [0], [0], [1], [0, 0, 1, 1], [], []>} : vector<8x32xbf16>, vector<32x128xbf16>, vector<8x128xf32> -> vector<8x128xf32>
    %92 = arith.addf %89, %91 : vector<8x128xf32>
    %93 = arith.negf %92 : vector<8x128xf32>
    %94 = math.exp %93 : vector<8x128xf32>
    %cst_21 = arith.constant 1.000000e+00 : f32
    %95 = vector.broadcast %cst_21 : f32 to vector<8x128xf32>
    %96 = arith.addf %95, %94 : vector<8x128xf32>
    %97 = arith.divf %95, %96 : vector<8x128xf32>
    %98 = math.tanh %92 : vector<8x128xf32>
    %99 = vector.extract_strided_slice %97 {offsets = [0, 0], sizes = [8, 32], strides = [1, 1]} : vector<8x128xf32> to vector<8x32xf32>
    %100 = vector.extract_strided_slice %97 {offsets = [0, 32], sizes = [8, 32], strides = [1, 1]} : vector<8x128xf32> to vector<8x32xf32>
    %101 = vector.extract_strided_slice %98 {offsets = [0, 64], sizes = [8, 32], strides = [1, 1]} : vector<8x128xf32> to vector<8x32xf32>
    %102 = vector.extract_strided_slice %97 {offsets = [0, 96], sizes = [8, 32], strides = [1, 1]} : vector<8x128xf32> to vector<8x32xf32>
    %103 = arith.mulf %100, %86 : vector<8x32xf32>
    %104 = arith.mulf %99, %101 : vector<8x32xf32>
    %105 = arith.addf %103, %104 : vector<8x32xf32>
    %106 = math.tanh %105 : vector<8x32xf32>
    %107 = arith.mulf %102, %106 : vector<8x32xf32>
    %108 = vector.extract_strided_slice %8 {offsets = [40, 0], sizes = [8, 128], strides = [1, 1]} : vector<64x128xf32> to vector<8x128xf32>
    %109 = arith.truncf %107 : vector<8x32xf32> to vector<8x32xbf16>
    %cst_22 = arith.constant dense<0.000000e+00> : vector<8x128xf32>
    %110 = tpu.matmul %109, %10, %cst_22 {dimension_numbers = #tpu.dot_dimension_numbers<[1], [0], [0], [1], [0, 0, 1, 1], [], []>} : vector<8x32xbf16>, vector<32x128xbf16>, vector<8x128xf32> -> vector<8x128xf32>
    %111 = arith.addf %108, %110 : vector<8x128xf32>
    %112 = arith.negf %111 : vector<8x128xf32>
    %113 = math.exp %112 : vector<8x128xf32>
    %cst_23 = arith.constant 1.000000e+00 : f32
    %114 = vector.broadcast %cst_23 : f32 to vector<8x128xf32>
    %115 = arith.addf %114, %113 : vector<8x128xf32>
    %116 = arith.divf %114, %115 : vector<8x128xf32>
    %117 = math.tanh %111 : vector<8x128xf32>
    %118 = vector.extract_strided_slice %116 {offsets = [0, 0], sizes = [8, 32], strides = [1, 1]} : vector<8x128xf32> to vector<8x32xf32>
    %119 = vector.extract_strided_slice %116 {offsets = [0, 32], sizes = [8, 32], strides = [1, 1]} : vector<8x128xf32> to vector<8x32xf32>
    %120 = vector.extract_strided_slice %117 {offsets = [0, 64], sizes = [8, 32], strides = [1, 1]} : vector<8x128xf32> to vector<8x32xf32>
    %121 = vector.extract_strided_slice %116 {offsets = [0, 96], sizes = [8, 32], strides = [1, 1]} : vector<8x128xf32> to vector<8x32xf32>
    %122 = arith.mulf %119, %105 : vector<8x32xf32>
    %123 = arith.mulf %118, %120 : vector<8x32xf32>
    %124 = arith.addf %122, %123 : vector<8x32xf32>
    %125 = math.tanh %124 : vector<8x32xf32>
    %126 = arith.mulf %121, %125 : vector<8x32xf32>
    %127 = vector.extract_strided_slice %8 {offsets = [48, 0], sizes = [8, 128], strides = [1, 1]} : vector<64x128xf32> to vector<8x128xf32>
    %128 = arith.truncf %126 : vector<8x32xf32> to vector<8x32xbf16>
    %cst_24 = arith.constant dense<0.000000e+00> : vector<8x128xf32>
    %129 = tpu.matmul %128, %10, %cst_24 {dimension_numbers = #tpu.dot_dimension_numbers<[1], [0], [0], [1], [0, 0, 1, 1], [], []>} : vector<8x32xbf16>, vector<32x128xbf16>, vector<8x128xf32> -> vector<8x128xf32>
    %130 = arith.addf %127, %129 : vector<8x128xf32>
    %131 = arith.negf %130 : vector<8x128xf32>
    %132 = math.exp %131 : vector<8x128xf32>
    %cst_25 = arith.constant 1.000000e+00 : f32
    %133 = vector.broadcast %cst_25 : f32 to vector<8x128xf32>
    %134 = arith.addf %133, %132 : vector<8x128xf32>
    %135 = arith.divf %133, %134 : vector<8x128xf32>
    %136 = math.tanh %130 : vector<8x128xf32>
    %137 = vector.extract_strided_slice %135 {offsets = [0, 0], sizes = [8, 32], strides = [1, 1]} : vector<8x128xf32> to vector<8x32xf32>
    %138 = vector.extract_strided_slice %135 {offsets = [0, 32], sizes = [8, 32], strides = [1, 1]} : vector<8x128xf32> to vector<8x32xf32>
    %139 = vector.extract_strided_slice %136 {offsets = [0, 64], sizes = [8, 32], strides = [1, 1]} : vector<8x128xf32> to vector<8x32xf32>
    %140 = vector.extract_strided_slice %135 {offsets = [0, 96], sizes = [8, 32], strides = [1, 1]} : vector<8x128xf32> to vector<8x32xf32>
    %141 = arith.mulf %138, %124 : vector<8x32xf32>
    %142 = arith.mulf %137, %139 : vector<8x32xf32>
    %143 = arith.addf %141, %142 : vector<8x32xf32>
    %144 = math.tanh %143 : vector<8x32xf32>
    %145 = arith.mulf %140, %144 : vector<8x32xf32>
    %146 = vector.extract_strided_slice %8 {offsets = [56, 0], sizes = [8, 128], strides = [1, 1]} : vector<64x128xf32> to vector<8x128xf32>
    %147 = arith.truncf %145 : vector<8x32xf32> to vector<8x32xbf16>
    %cst_26 = arith.constant dense<0.000000e+00> : vector<8x128xf32>
    %148 = tpu.matmul %147, %10, %cst_26 {dimension_numbers = #tpu.dot_dimension_numbers<[1], [0], [0], [1], [0, 0, 1, 1], [], []>} : vector<8x32xbf16>, vector<32x128xbf16>, vector<8x128xf32> -> vector<8x128xf32>
    %149 = arith.addf %146, %148 : vector<8x128xf32>
    %150 = arith.negf %149 : vector<8x128xf32>
    %151 = math.exp %150 : vector<8x128xf32>
    %cst_27 = arith.constant 1.000000e+00 : f32
    %152 = vector.broadcast %cst_27 : f32 to vector<8x128xf32>
    %153 = arith.addf %152, %151 : vector<8x128xf32>
    %154 = arith.divf %152, %153 : vector<8x128xf32>
    %155 = math.tanh %149 : vector<8x128xf32>
    %156 = vector.extract_strided_slice %154 {offsets = [0, 0], sizes = [8, 32], strides = [1, 1]} : vector<8x128xf32> to vector<8x32xf32>
    %157 = vector.extract_strided_slice %154 {offsets = [0, 32], sizes = [8, 32], strides = [1, 1]} : vector<8x128xf32> to vector<8x32xf32>
    %158 = vector.extract_strided_slice %155 {offsets = [0, 64], sizes = [8, 32], strides = [1, 1]} : vector<8x128xf32> to vector<8x32xf32>
    %159 = vector.extract_strided_slice %154 {offsets = [0, 96], sizes = [8, 32], strides = [1, 1]} : vector<8x128xf32> to vector<8x32xf32>
    %160 = arith.mulf %157, %143 : vector<8x32xf32>
    %161 = arith.mulf %156, %158 : vector<8x32xf32>
    %162 = arith.addf %160, %161 : vector<8x32xf32>
    %163 = math.tanh %162 : vector<8x32xf32>
    %164 = arith.mulf %159, %163 : vector<8x32xf32>
    %165 = tpu.concatenate %31, %50, %69, %88, %107, %126, %145, %164 in 0 : vector<8x32xf32>, vector<8x32xf32>, vector<8x32xf32>, vector<8x32xf32>, vector<8x32xf32>, vector<8x32xf32>, vector<8x32xf32>, vector<8x32xf32> -> vector<64x32xf32>
    %166 = arith.truncf %165 : vector<64x32xf32> to vector<64x32xbf16>
    %c1 = arith.constant 1 : index
    %c0_28 = arith.constant 0 : index
    %c0_29 = arith.constant 0 : index
    %167 = vector.load %arg1[%c1, %c0_28, %c0_29] : memref<2x32x128xbf16, #tpu.memory_space<vmem>>, vector<1x32x128xbf16>
    %168 = vector.shape_cast %167 : vector<1x32x128xbf16> to vector<32x128xbf16>
    %cst_30 = arith.constant dense<0.000000e+00> : vector<64x128xf32>
    %169 = tpu.matmul %166, %168, %cst_30 {dimension_numbers = #tpu.dot_dimension_numbers<[1], [0], [0], [1], [0, 0, 1, 1], [], []>} : vector<64x32xbf16>, vector<32x128xbf16>, vector<64x128xf32> -> vector<64x128xf32>
    %c1_31 = arith.constant 1 : index
    %c0_32 = arith.constant 0 : index
    %c0_33 = arith.constant 0 : index
    %170 = vector.load %arg3[%c1_31, %c0_32, %c0_33] : memref<2x1x128xf32, #tpu.memory_space<vmem>>, vector<1x1x128xf32>
    %171 = vector.shape_cast %170 : vector<1x1x128xf32> to vector<1x128xf32>
    %172 = vector.broadcast %171 : vector<1x128xf32> to vector<64x128xf32>
    %173 = arith.addf %169, %172 : vector<64x128xf32>
    %c1_34 = arith.constant 1 : index
    %c0_35 = arith.constant 0 : index
    %c0_36 = arith.constant 0 : index
    %174 = vector.load %arg2[%c1_34, %c0_35, %c0_36] : memref<2x32x128xbf16, #tpu.memory_space<vmem>>, vector<1x32x128xbf16>
    %175 = vector.shape_cast %174 : vector<1x32x128xbf16> to vector<32x128xbf16>
    %cst_37 = arith.constant 0.000000e+00 : f32
    %176 = vector.broadcast %cst_37 : f32 to vector<8x32xf32>
    %cst_38 = arith.constant 0.000000e+00 : f32
    %177 = vector.broadcast %cst_38 : f32 to vector<8x32xf32>
    %178 = vector.extract_strided_slice %173 {offsets = [0, 0], sizes = [8, 128], strides = [1, 1]} : vector<64x128xf32> to vector<8x128xf32>
    %179 = arith.truncf %176 : vector<8x32xf32> to vector<8x32xbf16>
    %cst_39 = arith.constant dense<0.000000e+00> : vector<8x128xf32>
    %180 = tpu.matmul %179, %175, %cst_39 {dimension_numbers = #tpu.dot_dimension_numbers<[1], [0], [0], [1], [0, 0, 1, 1], [], []>} : vector<8x32xbf16>, vector<32x128xbf16>, vector<8x128xf32> -> vector<8x128xf32>
    %181 = arith.addf %178, %180 : vector<8x128xf32>
    %182 = arith.negf %181 : vector<8x128xf32>
    %183 = math.exp %182 : vector<8x128xf32>
    %cst_40 = arith.constant 1.000000e+00 : f32
    %184 = vector.broadcast %cst_40 : f32 to vector<8x128xf32>
    %185 = arith.addf %184, %183 : vector<8x128xf32>
    %186 = arith.divf %184, %185 : vector<8x128xf32>
    %187 = math.tanh %181 : vector<8x128xf32>
    %188 = vector.extract_strided_slice %186 {offsets = [0, 0], sizes = [8, 32], strides = [1, 1]} : vector<8x128xf32> to vector<8x32xf32>
    %189 = vector.extract_strided_slice %186 {offsets = [0, 32], sizes = [8, 32], strides = [1, 1]} : vector<8x128xf32> to vector<8x32xf32>
    %190 = vector.extract_strided_slice %187 {offsets = [0, 64], sizes = [8, 32], strides = [1, 1]} : vector<8x128xf32> to vector<8x32xf32>
    %191 = vector.extract_strided_slice %186 {offsets = [0, 96], sizes = [8, 32], strides = [1, 1]} : vector<8x128xf32> to vector<8x32xf32>
    %192 = arith.mulf %189, %177 : vector<8x32xf32>
    %193 = arith.mulf %188, %190 : vector<8x32xf32>
    %194 = arith.addf %192, %193 : vector<8x32xf32>
    %195 = math.tanh %194 : vector<8x32xf32>
    %196 = arith.mulf %191, %195 : vector<8x32xf32>
    %197 = vector.extract_strided_slice %173 {offsets = [8, 0], sizes = [8, 128], strides = [1, 1]} : vector<64x128xf32> to vector<8x128xf32>
    %198 = arith.truncf %196 : vector<8x32xf32> to vector<8x32xbf16>
    %cst_41 = arith.constant dense<0.000000e+00> : vector<8x128xf32>
    %199 = tpu.matmul %198, %175, %cst_41 {dimension_numbers = #tpu.dot_dimension_numbers<[1], [0], [0], [1], [0, 0, 1, 1], [], []>} : vector<8x32xbf16>, vector<32x128xbf16>, vector<8x128xf32> -> vector<8x128xf32>
    %200 = arith.addf %197, %199 : vector<8x128xf32>
    %201 = arith.negf %200 : vector<8x128xf32>
    %202 = math.exp %201 : vector<8x128xf32>
    %cst_42 = arith.constant 1.000000e+00 : f32
    %203 = vector.broadcast %cst_42 : f32 to vector<8x128xf32>
    %204 = arith.addf %203, %202 : vector<8x128xf32>
    %205 = arith.divf %203, %204 : vector<8x128xf32>
    %206 = math.tanh %200 : vector<8x128xf32>
    %207 = vector.extract_strided_slice %205 {offsets = [0, 0], sizes = [8, 32], strides = [1, 1]} : vector<8x128xf32> to vector<8x32xf32>
    %208 = vector.extract_strided_slice %205 {offsets = [0, 32], sizes = [8, 32], strides = [1, 1]} : vector<8x128xf32> to vector<8x32xf32>
    %209 = vector.extract_strided_slice %206 {offsets = [0, 64], sizes = [8, 32], strides = [1, 1]} : vector<8x128xf32> to vector<8x32xf32>
    %210 = vector.extract_strided_slice %205 {offsets = [0, 96], sizes = [8, 32], strides = [1, 1]} : vector<8x128xf32> to vector<8x32xf32>
    %211 = arith.mulf %208, %194 : vector<8x32xf32>
    %212 = arith.mulf %207, %209 : vector<8x32xf32>
    %213 = arith.addf %211, %212 : vector<8x32xf32>
    %214 = math.tanh %213 : vector<8x32xf32>
    %215 = arith.mulf %210, %214 : vector<8x32xf32>
    %216 = vector.extract_strided_slice %173 {offsets = [16, 0], sizes = [8, 128], strides = [1, 1]} : vector<64x128xf32> to vector<8x128xf32>
    %217 = arith.truncf %215 : vector<8x32xf32> to vector<8x32xbf16>
    %cst_43 = arith.constant dense<0.000000e+00> : vector<8x128xf32>
    %218 = tpu.matmul %217, %175, %cst_43 {dimension_numbers = #tpu.dot_dimension_numbers<[1], [0], [0], [1], [0, 0, 1, 1], [], []>} : vector<8x32xbf16>, vector<32x128xbf16>, vector<8x128xf32> -> vector<8x128xf32>
    %219 = arith.addf %216, %218 : vector<8x128xf32>
    %220 = arith.negf %219 : vector<8x128xf32>
    %221 = math.exp %220 : vector<8x128xf32>
    %cst_44 = arith.constant 1.000000e+00 : f32
    %222 = vector.broadcast %cst_44 : f32 to vector<8x128xf32>
    %223 = arith.addf %222, %221 : vector<8x128xf32>
    %224 = arith.divf %222, %223 : vector<8x128xf32>
    %225 = math.tanh %219 : vector<8x128xf32>
    %226 = vector.extract_strided_slice %224 {offsets = [0, 0], sizes = [8, 32], strides = [1, 1]} : vector<8x128xf32> to vector<8x32xf32>
    %227 = vector.extract_strided_slice %224 {offsets = [0, 32], sizes = [8, 32], strides = [1, 1]} : vector<8x128xf32> to vector<8x32xf32>
    %228 = vector.extract_strided_slice %225 {offsets = [0, 64], sizes = [8, 32], strides = [1, 1]} : vector<8x128xf32> to vector<8x32xf32>
    %229 = vector.extract_strided_slice %224 {offsets = [0, 96], sizes = [8, 32], strides = [1, 1]} : vector<8x128xf32> to vector<8x32xf32>
    %230 = arith.mulf %227, %213 : vector<8x32xf32>
    %231 = arith.mulf %226, %228 : vector<8x32xf32>
    %232 = arith.addf %230, %231 : vector<8x32xf32>
    %233 = math.tanh %232 : vector<8x32xf32>
    %234 = arith.mulf %229, %233 : vector<8x32xf32>
    %235 = vector.extract_strided_slice %173 {offsets = [24, 0], sizes = [8, 128], strides = [1, 1]} : vector<64x128xf32> to vector<8x128xf32>
    %236 = arith.truncf %234 : vector<8x32xf32> to vector<8x32xbf16>
    %cst_45 = arith.constant dense<0.000000e+00> : vector<8x128xf32>
    %237 = tpu.matmul %236, %175, %cst_45 {dimension_numbers = #tpu.dot_dimension_numbers<[1], [0], [0], [1], [0, 0, 1, 1], [], []>} : vector<8x32xbf16>, vector<32x128xbf16>, vector<8x128xf32> -> vector<8x128xf32>
    %238 = arith.addf %235, %237 : vector<8x128xf32>
    %239 = arith.negf %238 : vector<8x128xf32>
    %240 = math.exp %239 : vector<8x128xf32>
    %cst_46 = arith.constant 1.000000e+00 : f32
    %241 = vector.broadcast %cst_46 : f32 to vector<8x128xf32>
    %242 = arith.addf %241, %240 : vector<8x128xf32>
    %243 = arith.divf %241, %242 : vector<8x128xf32>
    %244 = math.tanh %238 : vector<8x128xf32>
    %245 = vector.extract_strided_slice %243 {offsets = [0, 0], sizes = [8, 32], strides = [1, 1]} : vector<8x128xf32> to vector<8x32xf32>
    %246 = vector.extract_strided_slice %243 {offsets = [0, 32], sizes = [8, 32], strides = [1, 1]} : vector<8x128xf32> to vector<8x32xf32>
    %247 = vector.extract_strided_slice %244 {offsets = [0, 64], sizes = [8, 32], strides = [1, 1]} : vector<8x128xf32> to vector<8x32xf32>
    %248 = vector.extract_strided_slice %243 {offsets = [0, 96], sizes = [8, 32], strides = [1, 1]} : vector<8x128xf32> to vector<8x32xf32>
    %249 = arith.mulf %246, %232 : vector<8x32xf32>
    %250 = arith.mulf %245, %247 : vector<8x32xf32>
    %251 = arith.addf %249, %250 : vector<8x32xf32>
    %252 = math.tanh %251 : vector<8x32xf32>
    %253 = arith.mulf %248, %252 : vector<8x32xf32>
    %254 = vector.extract_strided_slice %173 {offsets = [32, 0], sizes = [8, 128], strides = [1, 1]} : vector<64x128xf32> to vector<8x128xf32>
    %255 = arith.truncf %253 : vector<8x32xf32> to vector<8x32xbf16>
    %cst_47 = arith.constant dense<0.000000e+00> : vector<8x128xf32>
    %256 = tpu.matmul %255, %175, %cst_47 {dimension_numbers = #tpu.dot_dimension_numbers<[1], [0], [0], [1], [0, 0, 1, 1], [], []>} : vector<8x32xbf16>, vector<32x128xbf16>, vector<8x128xf32> -> vector<8x128xf32>
    %257 = arith.addf %254, %256 : vector<8x128xf32>
    %258 = arith.negf %257 : vector<8x128xf32>
    %259 = math.exp %258 : vector<8x128xf32>
    %cst_48 = arith.constant 1.000000e+00 : f32
    %260 = vector.broadcast %cst_48 : f32 to vector<8x128xf32>
    %261 = arith.addf %260, %259 : vector<8x128xf32>
    %262 = arith.divf %260, %261 : vector<8x128xf32>
    %263 = math.tanh %257 : vector<8x128xf32>
    %264 = vector.extract_strided_slice %262 {offsets = [0, 0], sizes = [8, 32], strides = [1, 1]} : vector<8x128xf32> to vector<8x32xf32>
    %265 = vector.extract_strided_slice %262 {offsets = [0, 32], sizes = [8, 32], strides = [1, 1]} : vector<8x128xf32> to vector<8x32xf32>
    %266 = vector.extract_strided_slice %263 {offsets = [0, 64], sizes = [8, 32], strides = [1, 1]} : vector<8x128xf32> to vector<8x32xf32>
    %267 = vector.extract_strided_slice %262 {offsets = [0, 96], sizes = [8, 32], strides = [1, 1]} : vector<8x128xf32> to vector<8x32xf32>
    %268 = arith.mulf %265, %251 : vector<8x32xf32>
    %269 = arith.mulf %264, %266 : vector<8x32xf32>
    %270 = arith.addf %268, %269 : vector<8x32xf32>
    %271 = math.tanh %270 : vector<8x32xf32>
    %272 = arith.mulf %267, %271 : vector<8x32xf32>
    %273 = vector.extract_strided_slice %173 {offsets = [40, 0], sizes = [8, 128], strides = [1, 1]} : vector<64x128xf32> to vector<8x128xf32>
    %274 = arith.truncf %272 : vector<8x32xf32> to vector<8x32xbf16>
    %cst_49 = arith.constant dense<0.000000e+00> : vector<8x128xf32>
    %275 = tpu.matmul %274, %175, %cst_49 {dimension_numbers = #tpu.dot_dimension_numbers<[1], [0], [0], [1], [0, 0, 1, 1], [], []>} : vector<8x32xbf16>, vector<32x128xbf16>, vector<8x128xf32> -> vector<8x128xf32>
    %276 = arith.addf %273, %275 : vector<8x128xf32>
    %277 = arith.negf %276 : vector<8x128xf32>
    %278 = math.exp %277 : vector<8x128xf32>
    %cst_50 = arith.constant 1.000000e+00 : f32
    %279 = vector.broadcast %cst_50 : f32 to vector<8x128xf32>
    %280 = arith.addf %279, %278 : vector<8x128xf32>
    %281 = arith.divf %279, %280 : vector<8x128xf32>
    %282 = math.tanh %276 : vector<8x128xf32>
    %283 = vector.extract_strided_slice %281 {offsets = [0, 0], sizes = [8, 32], strides = [1, 1]} : vector<8x128xf32> to vector<8x32xf32>
    %284 = vector.extract_strided_slice %281 {offsets = [0, 32], sizes = [8, 32], strides = [1, 1]} : vector<8x128xf32> to vector<8x32xf32>
    %285 = vector.extract_strided_slice %282 {offsets = [0, 64], sizes = [8, 32], strides = [1, 1]} : vector<8x128xf32> to vector<8x32xf32>
    %286 = vector.extract_strided_slice %281 {offsets = [0, 96], sizes = [8, 32], strides = [1, 1]} : vector<8x128xf32> to vector<8x32xf32>
    %287 = arith.mulf %284, %270 : vector<8x32xf32>
    %288 = arith.mulf %283, %285 : vector<8x32xf32>
    %289 = arith.addf %287, %288 : vector<8x32xf32>
    %290 = math.tanh %289 : vector<8x32xf32>
    %291 = arith.mulf %286, %290 : vector<8x32xf32>
    %292 = vector.extract_strided_slice %173 {offsets = [48, 0], sizes = [8, 128], strides = [1, 1]} : vector<64x128xf32> to vector<8x128xf32>
    %293 = arith.truncf %291 : vector<8x32xf32> to vector<8x32xbf16>
    %cst_51 = arith.constant dense<0.000000e+00> : vector<8x128xf32>
    %294 = tpu.matmul %293, %175, %cst_51 {dimension_numbers = #tpu.dot_dimension_numbers<[1], [0], [0], [1], [0, 0, 1, 1], [], []>} : vector<8x32xbf16>, vector<32x128xbf16>, vector<8x128xf32> -> vector<8x128xf32>
    %295 = arith.addf %292, %294 : vector<8x128xf32>
    %296 = arith.negf %295 : vector<8x128xf32>
    %297 = math.exp %296 : vector<8x128xf32>
    %cst_52 = arith.constant 1.000000e+00 : f32
    %298 = vector.broadcast %cst_52 : f32 to vector<8x128xf32>
    %299 = arith.addf %298, %297 : vector<8x128xf32>
    %300 = arith.divf %298, %299 : vector<8x128xf32>
    %301 = math.tanh %295 : vector<8x128xf32>
    %302 = vector.extract_strided_slice %300 {offsets = [0, 0], sizes = [8, 32], strides = [1, 1]} : vector<8x128xf32> to vector<8x32xf32>
    %303 = vector.extract_strided_slice %300 {offsets = [0, 32], sizes = [8, 32], strides = [1, 1]} : vector<8x128xf32> to vector<8x32xf32>
    %304 = vector.extract_strided_slice %301 {offsets = [0, 64], sizes = [8, 32], strides = [1, 1]} : vector<8x128xf32> to vector<8x32xf32>
    %305 = vector.extract_strided_slice %300 {offsets = [0, 96], sizes = [8, 32], strides = [1, 1]} : vector<8x128xf32> to vector<8x32xf32>
    %306 = arith.mulf %303, %289 : vector<8x32xf32>
    %307 = arith.mulf %302, %304 : vector<8x32xf32>
    %308 = arith.addf %306, %307 : vector<8x32xf32>
    %309 = math.tanh %308 : vector<8x32xf32>
    %310 = arith.mulf %305, %309 : vector<8x32xf32>
    %311 = vector.extract_strided_slice %173 {offsets = [56, 0], sizes = [8, 128], strides = [1, 1]} : vector<64x128xf32> to vector<8x128xf32>
    %312 = arith.truncf %310 : vector<8x32xf32> to vector<8x32xbf16>
    %cst_53 = arith.constant dense<0.000000e+00> : vector<8x128xf32>
    %313 = tpu.matmul %312, %175, %cst_53 {dimension_numbers = #tpu.dot_dimension_numbers<[1], [0], [0], [1], [0, 0, 1, 1], [], []>} : vector<8x32xbf16>, vector<32x128xbf16>, vector<8x128xf32> -> vector<8x128xf32>
    %314 = arith.addf %311, %313 : vector<8x128xf32>
    %315 = arith.negf %314 : vector<8x128xf32>
    %316 = math.exp %315 : vector<8x128xf32>
    %cst_54 = arith.constant 1.000000e+00 : f32
    %317 = vector.broadcast %cst_54 : f32 to vector<8x128xf32>
    %318 = arith.addf %317, %316 : vector<8x128xf32>
    %319 = arith.divf %317, %318 : vector<8x128xf32>
    %320 = math.tanh %314 : vector<8x128xf32>
    %321 = vector.extract_strided_slice %319 {offsets = [0, 0], sizes = [8, 32], strides = [1, 1]} : vector<8x128xf32> to vector<8x32xf32>
    %322 = vector.extract_strided_slice %319 {offsets = [0, 32], sizes = [8, 32], strides = [1, 1]} : vector<8x128xf32> to vector<8x32xf32>
    %323 = vector.extract_strided_slice %320 {offsets = [0, 64], sizes = [8, 32], strides = [1, 1]} : vector<8x128xf32> to vector<8x32xf32>
    %324 = vector.extract_strided_slice %319 {offsets = [0, 96], sizes = [8, 32], strides = [1, 1]} : vector<8x128xf32> to vector<8x32xf32>
    %325 = arith.mulf %322, %308 : vector<8x32xf32>
    %326 = arith.mulf %321, %323 : vector<8x32xf32>
    %327 = arith.addf %325, %326 : vector<8x32xf32>
    %328 = math.tanh %327 : vector<8x32xf32>
    %329 = arith.mulf %324, %328 : vector<8x32xf32>
    %330 = tpu.concatenate %196, %215, %234, %253, %272, %291, %310, %329 in 0 : vector<8x32xf32>, vector<8x32xf32>, vector<8x32xf32>, vector<8x32xf32>, vector<8x32xf32>, vector<8x32xf32>, vector<8x32xf32>, vector<8x32xf32> -> vector<64x32xf32>
    %cst_55 = arith.constant 0.000000e+00 : f32
    %331 = vector.broadcast %cst_55 : f32 to vector<64x32xf32>
    %332 = arith.maximumf %330, %331 : vector<64x32xf32>
    %c0_56 = arith.constant 0 : index
    %c0_57 = arith.constant 0 : index
    %333 = vector.load %arg6[%c0_56, %c0_57] : memref<64x32xf32, #tpu.memory_space<vmem>>, vector<64x32xf32>
    tpu.vector_store %arg6[%c0_56, %c0_57], %332 {strides = array<i32>} : memref<64x32xf32, #tpu.memory_space<vmem>>, vector<64x32xf32>,
    %334 = arith.truncf %332 : vector<64x32xf32> to vector<64x32xbf16>
    %c0_58 = arith.constant 0 : index
    %c0_59 = arith.constant 0 : index
    %335 = vector.load %arg4[%c0_58, %c0_59] : memref<32x32xbf16, #tpu.memory_space<vmem>>, vector<32x32xbf16>
    %cst_60 = arith.constant dense<0.000000e+00> : vector<64x32xf32>
    %336 = tpu.matmul %334, %335, %cst_60 {dimension_numbers = #tpu.dot_dimension_numbers<[1], [0], [0], [1], [0, 0, 1, 1], [], []>} : vector<64x32xbf16>, vector<32x32xbf16>, vector<64x32xf32> -> vector<64x32xf32>
    %c0_61 = arith.constant 0 : index
    %c0_62 = arith.constant 0 : index
    %337 = vector.load %arg5[%c0_61, %c0_62] : memref<1x32xf32, #tpu.memory_space<vmem>>, vector<1x32xf32>
    %338 = vector.broadcast %337 : vector<1x32xf32> to vector<64x32xf32>
    %339 = arith.addf %336, %338 : vector<64x32xf32>
    %cst_63 = arith.constant 0.000000e+00 : f32
    %340 = vector.broadcast %cst_63 : f32 to vector<64x32xf32>
    %341 = arith.maximumf %339, %340 : vector<64x32xf32>
    %c0_64 = arith.constant 0 : index
    %c0_65 = arith.constant 0 : index
    %342 = vector.load %arg7[%c0_64, %c0_65] : memref<64x32xf32, #tpu.memory_space<vmem>>, vector<64x32xf32>
    tpu.vector_store %arg7[%c0_64, %c0_65], %341 {strides = array<i32>} : memref<64x32xf32, #tpu.memory_space<vmem>>, vector<64x32xf32>,
    return
  }
}

</mosaic_0001>

<llo_original>
// kernel: bt_network_forward.1
$region0: #{bt_network_forward.1}
  #allocation0 [shape = 'u32[]', space=smem, size = 0x4, offset = 0x4, fixed_abs, tag = 'smem constant byte address 0x4 - core index']
  #allocation1 [shape = 'u32[72,128]{1,0:T(1,128)}', space=vmem, size = 0x9000, scoped, tag = 'internal scratch']
  %s0 = inlined_call_operand.vmem [shape: f32[64,32], index: 0, kind: input, shape index: {}]
  %s1 = inlined_call_operand.vmem [shape: bf16[2,32,128], index: 1, kind: input, shape index: {}]
  %s2 = inlined_call_operand.vmem [shape: bf16[2,32,128], index: 2, kind: input, shape index: {}]
  %s3 = inlined_call_operand.vmem [shape: f32[2,1,128], index: 3, kind: input, shape index: {}]
  %s4 = inlined_call_operand.vmem [shape: bf16[32,32], index: 4, kind: input, shape index: {}]
  %s5 = inlined_call_operand.vmem [shape: f32[1,32], index: 5, kind: input, shape index: {}]
  %s6 = inlined_call_operand.vmem [shape: f32[64,32], index: 6, kind: output, shape index: {0}]
  %s7 = inlined_call_operand.vmem [shape: f32[64,32], index: 7, kind: output, shape index: {1}]
  %8 = xla_tuple %s6, %s7
  %s9 = sld [smem:[#allocation0]]
  $region42: #{bt_network_forward.1} parent=0
    _
  %s11 = ssub.s32 1, %s9
  %s12 = scalar_select 0, %s11, %s9
  // Predicated region
  $region2: #{bt_network_forward.1} parent=0 // pred_check
    _
  $region3: #{bt_network_forward.1} parent=0 // pred_check_branch
    %14 = sbr.rel (0) target = $region5
  $region4: #{bt_network_forward.1} parent=0 // pred_region
    _
  $region5: #{bt_network_forward.1} parent=0 // pred_fallthru
    _
  // Predicated region
  $region6: #{bt_network_forward.1} parent=0 // pred_check
    _
  $region7: #{bt_network_forward.1} parent=0 // pred_check_branch
    %16 = sbr.rel (0) target = $region9
  $region8: #{bt_network_forward.1} parent=0 // pred_region
    _
  $region9: #{bt_network_forward.1} parent=0 // pred_fallthru
    _
  // Predicated region
  $region10: #{bt_network_forward.1} parent=0 // pred_check
    _
  $region11: #{bt_network_forward.1} parent=0 // pred_check_branch
    %18 = sbr.rel (0) target = $region13
  $region12: #{bt_network_forward.1} parent=0 // pred_region
    _
  $region13: #{bt_network_forward.1} parent=0 // pred_fallthru
    _
  // Predicated region
  $region14: #{bt_network_forward.1} parent=0 // pred_check
    _
  $region15: #{bt_network_forward.1} parent=0 // pred_check_branch
    %20 = sbr.rel (0) target = $region17
  $region16: #{bt_network_forward.1} parent=0 // pred_region
    _
  $region17: #{bt_network_forward.1} parent=0 // pred_fallthru
    _
  // Predicated region
  $region18: #{bt_network_forward.1} parent=0 // pred_check
    _
  $region19: #{bt_network_forward.1} parent=0 // pred_check_branch
    %22 = sbr.rel (0) target = $region21
  $region20: #{bt_network_forward.1} parent=0 // pred_region
    _
  $region21: #{bt_network_forward.1} parent=0 // pred_fallthru
    _
  // Predicated region
  $region22: #{bt_network_forward.1} parent=0 // pred_check
    _
  $region23: #{bt_network_forward.1} parent=0 // pred_check_branch
    %24 = sbr.rel (0) target = $region25
  $region24: #{bt_network_forward.1} parent=0 // pred_region
    _
  $region25: #{bt_network_forward.1} parent=0 // pred_fallthru
    _
  %v26 = vld [vmem:[%s0] sm:$0xff]
  %v27 = vld [vmem:[%s0 + $0x8] sm:$0xff]
  %v28 = vld [vmem:[%s0 + $0x10] sm:$0xff]
  %v29 = vld [vmem:[%s0 + $0x18] sm:$0xff]
  %v30 = vld [vmem:[%s0 + $0x20] sm:$0xff]
  %v31 = vld [vmem:[%s0 + $0x28] sm:$0xff]
  %v32 = vld [vmem:[%s0 + $0x30] sm:$0xff]
  %v33 = vld [vmem:[%s0 + $0x38] sm:$0xff]
  %v34 = vpack.c.bf16 %v27, %v26
  %v35 = vpack.c.bf16 %v29, %v28
  %v36 = vpack.c.bf16 %v31, %v30
  %v37 = vpack.c.bf16 %v33, %v32
  %v38 = vld [vmem:[%s1] sm:$0xf]
  %v39 = vld [vmem:[%s1 + $0x4] sm:$0xf]
  %v40 = vld [vmem:[%s1 + $0x8] sm:$0xf]
  %v41 = vld [vmem:[%s1 + $0xc] sm:$0xf]
  %v42 = vld [vmem:[%s3] sm:$0x1]
  %v44 = vperm.slane %v42, 0
  %v50 = vunpack.c.l.b16 %v38
  %v51 = vunpack.c.l.b16 %v39
  %v52 = vunpack.c.l.b16 %v40
  %v53 = vunpack.c.l.b16 %v41
  %v54 = vpack.c.b16 %v51, %v50
  %v55 = vpack.c.b16 %v53, %v52
  %vm58 = vcmask 261120
  %v60 = vsel %vm58, %v34, 0
  %v63 = vsel %vm58, %v35, 0
  %v66 = vsel %vm58, %v36, 0
  %v69 = vsel %vm58, %v37, 0
  %71 = vmatpush.bf16.msra.mxu0 0
  %72 = vmatpush.bf16.msra.mxu0 0
  %73 = vmatpush.bf16.msra.mxu0 0
  %74 = vmatpush.bf16.msra.mxu0 0
  %75 = vmatpush.bf16.msra.mxu0 0
  %76 = vmatpush.bf16.msra.mxu0 0
  %77 = vmatpush.bf16.msra.mxu0 %v55
  %78 = vmatpush.bf16.msra.mxu0 %v54
  %79 = vmatmul.bf16.gmra.mxu0 %v60
  %v80 = vpop.f32.mrf.mxu0
  %v81 = vadd.f32 %v44, %v80
  %v82 = vpop.f32.mrf.mxu0
  %v83 = vadd.f32 %v44, %v82
  %84 = vmatmul.bf16.gmra.mxu0 %v63
  %v85 = vpop.f32.mrf.mxu0
  %v86 = vadd.f32 %v44, %v85
  %v87 = vpop.f32.mrf.mxu0
  %v88 = vadd.f32 %v44, %v87
  %89 = vmatmul.bf16.gmra.mxu0 %v66
  %v90 = vpop.f32.mrf.mxu0
  %v91 = vadd.f32 %v44, %v90
  %v92 = vpop.f32.mrf.mxu0
  %v93 = vadd.f32 %v44, %v92
  %94 = vmatmul.bf16.gmra.mxu0 %v69
  %v95 = vpop.f32.mrf.mxu0
  %v96 = vadd.f32 %v44, %v95
  %v97 = vpop.f32.mrf.mxu0
  %v98 = vadd.f32 %v44, %v97
  %99 = vdwg.mxu0
  %v100 = vld [vmem:[%s2] sm:$0xf]
  %v101 = vld [vmem:[%s2 + $0x4] sm:$0xf]
  %v102 = vld [vmem:[%s2 + $0x8] sm:$0xf]
  %v103 = vld [vmem:[%s2 + $0xc] sm:$0xf]
  %v108 = vunpack.c.l.b16 %v100
  %v109 = vunpack.c.l.b16 %v101
  %v110 = vunpack.c.l.b16 %v102
  %v111 = vunpack.c.l.b16 %v103
  %v112 = vpack.c.b16 %v109, %v108
  %v113 = vpack.c.b16 %v111, %v110
  %v117 = vsel %vm58, 0, 0
  %119 = vmatpush.bf16.msra.mxu0 0
  %120 = vmatpush.bf16.msra.mxu0 0
  %121 = vmatpush.bf16.msra.mxu0 0
  %122 = vmatpush.bf16.msra.mxu0 0
  %123 = vmatpush.bf16.msra.mxu0 0
  %124 = vmatpush.bf16.msra.mxu0 0
  %125 = vmatpush.bf16.msra.mxu0 %v113
  %126 = vmatpush.bf16.msra.mxu0 %v112
  %127 = vmatmul.bf16.gmra.mxu0 %v117
  %v128 = vpop.f32.mrf.mxu0
  %v129 = vadd.f32 0.0, %v128
  %v130 = vpop.f32.mrf.mxu0
  %131 = vdwg.mxu0
  %v132 = vadd.f32 %v81, %v129
  %v133 = vxor.u32 %v132, 2147483648
  %v134 = vmul.f32 %v133, 1.442695
  %v135 = vpow.pop %v134
  %v136 = vadd.f32 %v135, 1.0
  %v137 = vrcp.pop %v136
  %v138 = vmul.f32 %v136, %v137
  %v139 = vsub.f32 1.0, %v138
  %v140 = vmul.f32 %v137, %v139
  %v141 = vadd.f32 %v137, %v140
  %vm142 = vweird.f32 %v136
  %vm143 = vweird.f32 %v137
  %vm144 = vmor %vm142, %vm143
  %v145 = vsel %vm144, %v137, %v141
  %v146 = vand.u32 2147483647, %v136
  %vm147 = vcmp.eq.f32.partialorder %v146, 8.507059e+37
  %v148 = vand.u32 %v136, 2147483648
  %v149 = vor.u32 1.1754944e-38, %v148
  %v150 = vsel %vm147, %v149, %v145
  %v151 = vmul.f32 1.0, %v150
  %v152 = vtanh.pop %v132
  %v153 = vmul.f32 %v151, 0.0
  %155 = vrot.lane.b32.xlu0 %v152, 64
  %v156 = vpop.permute.xlu0 %155
  %v158 = vmul.f32 %v151, %v156
  %160 = vrot.lane.b32.xlu0 %v158, 32
  %v161 = vpop.permute.xlu0 %160
  %v163 = vadd.f32 %v153, %v161
  %v164 = vtanh.pop %v163
  %166 = vrot.lane.b32.xlu0 %v164, 64
  %v167 = vpop.permute.xlu0 %166
  %v169 = vmul.f32 %v151, %v167
  %v170 = vpack.c.bf16 %v169, %v169
  %172 = vrot.lane.b32.xlu0 %v170, 32
  %v173 = vpop.permute.xlu0 %172
  %v175 = vsel %vm58, %v173, 0
  %177 = vmatpush.bf16.msra.mxu0 0
  %178 = vmatpush.bf16.msra.mxu0 0
  %179 = vmatpush.bf16.msra.mxu0 0
  %180 = vmatpush.bf16.msra.mxu0 0
  %181 = vmatpush.bf16.msra.mxu0 0
  %182 = vmatpush.bf16.msra.mxu0 0
  %183 = vmatpush.bf16.msra.mxu0 %v113
  %184 = vmatpush.bf16.msra.mxu0 %v112
  %185 = vmatmul.bf16.gmra.mxu0 %v175
  %v186 = vpop.f32.mrf.mxu0
  %v187 = vadd.f32 0.0, %v186
  %v188 = vpop.f32.mrf.mxu0
  %189 = vdwg.mxu0
  %v190 = vadd.f32 %v83, %v187
  %v191 = vxor.u32 %v190, 2147483648
  %v192 = vmul.f32 %v191, 1.442695
  %v193 = vpow.pop %v192
  %v194 = vadd.f32 %v193, 1.0
  %v195 = vrcp.pop %v194
  %v196 = vmul.f32 %v194, %v195
  %v197 = vsub.f32 1.0, %v196
  %v198 = vmul.f32 %v195, %v197
  %v199 = vadd.f32 %v195, %v198
  %vm200 = vweird.f32 %v194
  %vm201 = vweird.f32 %v195
  %vm202 = vmor %vm200, %vm201
  %v203 = vsel %vm202, %v195, %v199
  %v204 = vand.u32 2147483647, %v194
  %vm205 = vcmp.eq.f32.partialorder %v204, 8.507059e+37
  %v206 = vand.u32 %v194, 2147483648
  %v207 = vor.u32 1.1754944e-38, %v206
  %v208 = vsel %vm205, %v207, %v203
  %v209 = vmul.f32 1.0, %v208
  %v210 = vtanh.pop %v190
  %v211 = vmul.f32 %v209, %v163
  %213 = vrot.lane.b32.xlu0 %v210, 64
  %v214 = vpop.permute.xlu0 %213
  %v216 = vmul.f32 %v209, %v214
  %218 = vrot.lane.b32.xlu0 %v216, 32
  %v219 = vpop.permute.xlu0 %218
  %v221 = vadd.f32 %v211, %v219
  %v222 = vtanh.pop %v221
  %224 = vrot.lane.b32.xlu0 %v222, 64
  %v225 = vpop.permute.xlu0 %224
  %v227 = vmul.f32 %v209, %v225
  %v228 = vpack.c.bf16 %v227, %v227
  %230 = vrot.lane.b32.xlu0 %v228, 32
  %v231 = vpop.permute.xlu0 %230
  %v233 = vsel %vm58, %v231, 0
  %235 = vmatpush.bf16.msra.mxu0 0
  %236 = vmatpush.bf16.msra.mxu0 0
  %237 = vmatpush.bf16.msra.mxu0 0
  %238 = vmatpush.bf16.msra.mxu0 0
  %239 = vmatpush.bf16.msra.mxu0 0
  %240 = vmatpush.bf16.msra.mxu0 0
  %241 = vmatpush.bf16.msra.mxu0 %v113
  %242 = vmatpush.bf16.msra.mxu0 %v112
  %243 = vmatmul.bf16.gmra.mxu0 %v233
  %v244 = vpop.f32.mrf.mxu0
  %v245 = vadd.f32 0.0, %v244
  %v246 = vpop.f32.mrf.mxu0
  %247 = vdwg.mxu0
  %v248 = vadd.f32 %v86, %v245
  %v249 = vxor.u32 %v248, 2147483648
  %v250 = vmul.f32 %v249, 1.442695
  %v251 = vpow.pop %v250
  %v252 = vadd.f32 %v251, 1.0
  %v253 = vrcp.pop %v252
  %v254 = vmul.f32 %v252, %v253
  %v255 = vsub.f32 1.0, %v254
  %v256 = vmul.f32 %v253, %v255
  %v257 = vadd.f32 %v253, %v256
  %vm258 = vweird.f32 %v252
  %vm259 = vweird.f32 %v253
  %vm260 = vmor %vm258, %vm259
  %v261 = vsel %vm260, %v253, %v257
  %v262 = vand.u32 2147483647, %v252
  %vm263 = vcmp.eq.f32.partialorder %v262, 8.507059e+37
  %v264 = vand.u32 %v252, 2147483648
  %v265 = vor.u32 1.1754944e-38, %v264
  %v266 = vsel %vm263, %v265, %v261
  %v267 = vmul.f32 1.0, %v266
  %v268 = vtanh.pop %v248
  %v269 = vmul.f32 %v267, %v221
  %271 = vrot.lane.b32.xlu0 %v268, 64
  %v272 = vpop.permute.xlu0 %271
  %v274 = vmul.f32 %v267, %v272
  %276 = vrot.lane.b32.xlu0 %v274, 32
  %v277 = vpop.permute.xlu0 %276
  %v279 = vadd.f32 %v269, %v277
  %v280 = vtanh.pop %v279
  %282 = vrot.lane.b32.xlu0 %v280, 64
  %v283 = vpop.permute.xlu0 %282
  %v285 = vmul.f32 %v267, %v283
  %v286 = vpack.c.bf16 %v285, %v285
  %288 = vrot.lane.b32.xlu0 %v286, 32
  %v289 = vpop.permute.xlu0 %288
  %v291 = vsel %vm58, %v289, 0
  %293 = vmatpush.bf16.msra.mxu0 0
  %294 = vmatpush.bf16.msra.mxu0 0
  %295 = vmatpush.bf16.msra.mxu0 0
  %296 = vmatpush.bf16.msra.mxu0 0
  %297 = vmatpush.bf16.msra.mxu0 0
  %298 = vmatpush.bf16.msra.mxu0 0
  %299 = vmatpush.bf16.msra.mxu0 %v113
  %300 = vmatpush.bf16.msra.mxu0 %v112
  %301 = vmatmul.bf16.gmra.mxu0 %v291
  %v302 = vpop.f32.mrf.mxu0
  %v303 = vadd.f32 0.0, %v302
  %v304 = vpop.f32.mrf.mxu0
  %305 = vdwg.mxu0
  %v306 = vadd.f32 %v88, %v303
  %v307 = vxor.u32 %v306, 2147483648
  %v308 = vmul.f32 %v307, 1.442695
  %v309 = vpow.pop %v308
  %v310 = vadd.f32 %v309, 1.0
  %v311 = vrcp.pop %v310
  %v312 = vmul.f32 %v310, %v311
  %v313 = vsub.f32 1.0, %v312
  %v314 = vmul.f32 %v311, %v313
  %v315 = vadd.f32 %v311, %v314
  %vm316 = vweird.f32 %v310
  %vm317 = vweird.f32 %v311
  %vm318 = vmor %vm316, %vm317
  %v319 = vsel %vm318, %v311, %v315
  %v320 = vand.u32 2147483647, %v310
  %vm321 = vcmp.eq.f32.partialorder %v320, 8.507059e+37
  %v322 = vand.u32 %v310, 2147483648
  %v323 = vor.u32 1.1754944e-38, %v322
  %v324 = vsel %vm321, %v323, %v319
  %v325 = vmul.f32 1.0, %v324
  %v326 = vtanh.pop %v306
  %v327 = vmul.f32 %v325, %v279
  %329 = vrot.lane.b32.xlu0 %v326, 64
  %v330 = vpop.permute.xlu0 %329
  %v332 = vmul.f32 %v325, %v330
  %334 = vrot.lane.b32.xlu0 %v332, 32
  %v335 = vpop.permute.xlu0 %334
  %v337 = vadd.f32 %v327, %v335
  %v338 = vtanh.pop %v337
  %340 = vrot.lane.b32.xlu0 %v338, 64
  %v341 = vpop.permute.xlu0 %340
  %v343 = vmul.f32 %v325, %v341
  %v344 = vpack.c.bf16 %v343, %v343
  %346 = vrot.lane.b32.xlu0 %v344, 32
  %v347 = vpop.permute.xlu0 %346
  %v349 = vsel %vm58, %v347, 0
  %351 = vmatpush.bf16.msra.mxu0 0
  %352 = vmatpush.bf16.msra.mxu0 0
  %353 = vmatpush.bf16.msra.mxu0 0
  %354 = vmatpush.bf16.msra.mxu0 0
  %355 = vmatpush.bf16.msra.mxu0 0
  %356 = vmatpush.bf16.msra.mxu0 0
  %357 = vmatpush.bf16.msra.mxu0 %v113
  %358 = vmatpush.bf16.msra.mxu0 %v112
  %359 = vmatmul.bf16.gmra.mxu0 %v349
  %v360 = vpop.f32.mrf.mxu0
  %v361 = vadd.f32 0.0, %v360
  %v362 = vpop.f32.mrf.mxu0
  %363 = vdwg.mxu0
  %v364 = vadd.f32 %v91, %v361
  %v365 = vxor.u32 %v364, 2147483648
  %v366 = vmul.f32 %v365, 1.442695
  %v367 = vpow.pop %v366
  %v368 = vadd.f32 %v367, 1.0
  %v369 = vrcp.pop %v368
  %v370 = vmul.f32 %v368, %v369
  %v371 = vsub.f32 1.0, %v370
  %v372 = vmul.f32 %v369, %v371
  %v373 = vadd.f32 %v369, %v372
  %vm374 = vweird.f32 %v368
  %vm375 = vweird.f32 %v369
  %vm376 = vmor %vm374, %vm375
  %v377 = vsel %vm376, %v369, %v373
  %v378 = vand.u32 2147483647, %v368
  %vm379 = vcmp.eq.f32.partialorder %v378, 8.507059e+37
  %v380 = vand.u32 %v368, 2147483648
  %v381 = vor.u32 1.1754944e-38, %v380
  %v382 = vsel %vm379, %v381, %v377
  %v383 = vmul.f32 1.0, %v382
  %v384 = vtanh.pop %v364
  %v385 = vmul.f32 %v383, %v337
  %387 = vrot.lane.b32.xlu0 %v384, 64
  %v388 = vpop.permute.xlu0 %387
  %v390 = vmul.f32 %v383, %v388
  %392 = vrot.lane.b32.xlu0 %v390, 32
  %v393 = vpop.permute.xlu0 %392
  %v395 = vadd.f32 %v385, %v393
  %v396 = vtanh.pop %v395
  %398 = vrot.lane.b32.xlu0 %v396, 64
  %v399 = vpop.permute.xlu0 %398
  %v401 = vmul.f32 %v383, %v399
  %v402 = vpack.c.bf16 %v401, %v401
  %404 = vrot.lane.b32.xlu0 %v402, 32
  %v405 = vpop.permute.xlu0 %404
  %v407 = vsel %vm58, %v405, 0
  %409 = vmatpush.bf16.msra.mxu0 0
  %410 = vmatpush.bf16.msra.mxu0 0
  %411 = vmatpush.bf16.msra.mxu0 0
  %412 = vmatpush.bf16.msra.mxu0 0
  %413 = vmatpush.bf16.msra.mxu0 0
  %414 = vmatpush.bf16.msra.mxu0 0
  %415 = vmatpush.bf16.msra.mxu0 %v113
  %416 = vmatpush.bf16.msra.mxu0 %v112
  %417 = vmatmul.bf16.gmra.mxu0 %v407
  %v418 = vpop.f32.mrf.mxu0
  %v419 = vadd.f32 0.0, %v418
  %v420 = vpop.f32.mrf.mxu0
  %421 = vdwg.mxu0
  %v422 = vadd.f32 %v93, %v419
  %v423 = vxor.u32 %v422, 2147483648
  %v424 = vmul.f32 %v423, 1.442695
  %v425 = vpow.pop %v424
  %v426 = vadd.f32 %v425, 1.0
  %v427 = vrcp.pop %v426
  %v428 = vmul.f32 %v426, %v427
  %v429 = vsub.f32 1.0, %v428
  %v430 = vmul.f32 %v427, %v429
  %v431 = vadd.f32 %v427, %v430
  %vm432 = vweird.f32 %v426
  %vm433 = vweird.f32 %v427
  %vm434 = vmor %vm432, %vm433
  %v435 = vsel %vm434, %v427, %v431
  %v436 = vand.u32 2147483647, %v426
  %vm437 = vcmp.eq.f32.partialorder %v436, 8.507059e+37
  %v438 = vand.u32 %v426, 2147483648
  %v439 = vor.u32 1.1754944e-38, %v438
  %v440 = vsel %vm437, %v439, %v435
  %v441 = vmul.f32 1.0, %v440
  %v442 = vtanh.pop %v422
  %v443 = vmul.f32 %v441, %v395
  %445 = vrot.lane.b32.xlu0 %v442, 64
  %v446 = vpop.permute.xlu0 %445
  %v448 = vmul.f32 %v441, %v446
  %450 = vrot.lane.b32.xlu0 %v448, 32
  %v451 = vpop.permute.xlu0 %450
  %v453 = vadd.f32 %v443, %v451
  %v454 = vtanh.pop %v453
  %456 = vrot.lane.b32.xlu0 %v454, 64
  %v457 = vpop.permute.xlu0 %456
  %v459 = vmul.f32 %v441, %v457
  %v460 = vpack.c.bf16 %v459, %v459
  %462 = vrot.lane.b32.xlu0 %v460, 32
  %v463 = vpop.permute.xlu0 %462
  %v465 = vsel %vm58, %v463, 0
  %467 = vmatpush.bf16.msra.mxu0 0
  %468 = vmatpush.bf16.msra.mxu0 0
  %469 = vmatpush.bf16.msra.mxu0 0
  %470 = vmatpush.bf16.msra.mxu0 0
  %471 = vmatpush.bf16.msra.mxu0 0
  %472 = vmatpush.bf16.msra.mxu0 0
  %473 = vmatpush.bf16.msra.mxu0 %v113
  %474 = vmatpush.bf16.msra.mxu0 %v112
  %475 = vmatmul.bf16.gmra.mxu0 %v465
  %v476 = vpop.f32.mrf.mxu0
  %v477 = vadd.f32 0.0, %v476
  %v478 = vpop.f32.mrf.mxu0
  %479 = vdwg.mxu0
  %v480 = vadd.f32 %v96, %v477
  %v481 = vxor.u32 %v480, 2147483648
  %v482 = vmul.f32 %v481, 1.442695
  %v483 = vpow.pop %v482
  %v484 = vadd.f32 %v483, 1.0
  %v485 = vrcp.pop %v484
  %v486 = vmul.f32 %v484, %v485
  %v487 = vsub.f32 1.0, %v486
  %v488 = vmul.f32 %v485, %v487
  %v489 = vadd.f32 %v485, %v488
  %vm490 = vweird.f32 %v484
  %vm491 = vweird.f32 %v485
  %vm492 = vmor %vm490, %vm491
  %v493 = vsel %vm492, %v485, %v489
  %v494 = vand.u32 2147483647, %v484
  %vm495 = vcmp.eq.f32.partialorder %v494, 8.507059e+37
  %v496 = vand.u32 %v484, 2147483648
  %v497 = vor.u32 1.1754944e-38, %v496
  %v498 = vsel %vm495, %v497, %v493
  %v499 = vmul.f32 1.0, %v498
  %v500 = vtanh.pop %v480
  %v501 = vmul.f32 %v499, %v453
  %503 = vrot.lane.b32.xlu0 %v500, 64
  %v504 = vpop.permute.xlu0 %503
  %v506 = vmul.f32 %v499, %v504
  %508 = vrot.lane.b32.xlu0 %v506, 32
  %v509 = vpop.permute.xlu0 %508
  %v511 = vadd.f32 %v501, %v509
  %v512 = vtanh.pop %v511
  %514 = vrot.lane.b32.xlu0 %v512, 64
  %v515 = vpop.permute.xlu0 %514
  %v517 = vmul.f32 %v499, %v515
  %v518 = vpack.c.bf16 %v517, %v517
  %520 = vrot.lane.b32.xlu0 %v518, 32
  %v521 = vpop.permute.xlu0 %520
  %v523 = vsel %vm58, %v521, 0
  %525 = vmatpush.bf16.msra.mxu0 0
  %526 = vmatpush.bf16.msra.mxu0 0
  %527 = vmatpush.bf16.msra.mxu0 0
  %528 = vmatpush.bf16.msra.mxu0 0
  %529 = vmatpush.bf16.msra.mxu0 0
  %530 = vmatpush.bf16.msra.mxu0 0
  %531 = vmatpush.bf16.msra.mxu0 %v113
  %532 = vmatpush.bf16.msra.mxu0 %v112
  %533 = vmatmul.bf16.gmra.mxu0 %v523
  %v534 = vpop.f32.mrf.mxu0
  %v535 = vadd.f32 0.0, %v534
  %v536 = vpop.f32.mrf.mxu0
  %537 = vdwg.mxu0
  %v538 = vadd.f32 %v98, %v535
  %v539 = vxor.u32 %v538, 2147483648
  %v540 = vmul.f32 %v539, 1.442695
  %v541 = vpow.pop %v540
  %v542 = vadd.f32 %v541, 1.0
  %v543 = vrcp.pop %v542
  %v544 = vmul.f32 %v542, %v543
  %v545 = vsub.f32 1.0, %v544
  %v546 = vmul.f32 %v543, %v545
  %v547 = vadd.f32 %v543, %v546
  %vm548 = vweird.f32 %v542
  %vm549 = vweird.f32 %v543
  %vm550 = vmor %vm548, %vm549
  %v551 = vsel %vm550, %v543, %v547
  %v552 = vand.u32 2147483647, %v542
  %vm553 = vcmp.eq.f32.partialorder %v552, 8.507059e+37
  %v554 = vand.u32 %v542, 2147483648
  %v555 = vor.u32 1.1754944e-38, %v554
  %v556 = vsel %vm553, %v555, %v551
  %v557 = vmul.f32 1.0, %v556
  %v558 = vtanh.pop %v538
  %v559 = vmul.f32 %v557, %v511
  %561 = vrot.lane.b32.xlu0 %v558, 64
  %v562 = vpop.permute.xlu0 %561
  %v564 = vmul.f32 %v557, %v562
  %566 = vrot.lane.b32.xlu0 %v564, 32
  %v567 = vpop.permute.xlu0 %566
  %v569 = vadd.f32 %v559, %v567
  %v570 = vtanh.pop %v569
  %572 = vrot.lane.b32.xlu0 %v570, 64
  %v573 = vpop.permute.xlu0 %572
  %v575 = vmul.f32 %v557, %v573
  %v576 = vpack.c.bf16 %v227, %v169
  %v577 = vpack.c.bf16 %v343, %v285
  %v578 = vpack.c.bf16 %v459, %v401
  %v579 = vpack.c.bf16 %v575, %v517
  %s580 = scalar_lea.vmem %s1, 16
  %v581 = vld [vmem:[%s580] sm:$0xf]
  %v582 = vld [vmem:[%s580 + $0x4] sm:$0xf]
  %v583 = vld [vmem:[%s580 + $0x8] sm:$0xf]
  %v584 = vld [vmem:[%s580 + $0xc] sm:$0xf]
  %s585 = scalar_lea.vmem %s3, 1
  %v586 = vld [vmem:[%s585] sm:$0x1]
  %v588 = vperm.slane %v586, 0
  %594 = vrot.lane.b32.xlu0 %v576, 32
  %v595 = vpop.permute.xlu0 %594
  %596 = vrot.lane.b32.xlu0 %v577, 32
  %v597 = vpop.permute.xlu0 %596
  %598 = vrot.lane.b32.xlu0 %v578, 32
  %v599 = vpop.permute.xlu0 %598
  %600 = vrot.lane.b32.xlu0 %v579, 32
  %v601 = vpop.permute.xlu0 %600
  %v606 = vunpack.c.l.b16 %v581
  %v607 = vunpack.c.l.b16 %v582
  %v608 = vunpack.c.l.b16 %v583
  %v609 = vunpack.c.l.b16 %v584
  %v610 = vpack.c.b16 %v607, %v606
  %v611 = vpack.c.b16 %v609, %v608
  %v615 = vsel %vm58, %v595, 0
  %v618 = vsel %vm58, %v597, 0
  %v621 = vsel %vm58, %v599, 0
  %v624 = vsel %vm58, %v601, 0
  %626 = vmatpush.bf16.msra.mxu0 0
  %627 = vmatpush.bf16.msra.mxu0 0
  %628 = vmatpush.bf16.msra.mxu0 0
  %629 = vmatpush.bf16.msra.mxu0 0
  %630 = vmatpush.bf16.msra.mxu0 0
  %631 = vmatpush.bf16.msra.mxu0 0
  %632 = vmatpush.bf16.msra.mxu0 %v611
  %633 = vmatpush.bf16.msra.mxu0 %v610
  %634 = vmatmul.bf16.gmra.mxu0 %v615
  %v635 = vpop.f32.mrf.mxu0
  %v636 = vadd.f32 %v588, %v635
  %v637 = vpop.f32.mrf.mxu0
  %v638 = vadd.f32 %v588, %v637
  %639 = vmatmul.bf16.gmra.mxu0 %v618
  %v640 = vpop.f32.mrf.mxu0
  %v641 = vadd.f32 %v588, %v640
  %v642 = vpop.f32.mrf.mxu0
  %v643 = vadd.f32 %v588, %v642
  %644 = vmatmul.bf16.gmra.mxu0 %v621
  %v645 = vpop.f32.mrf.mxu0
  %v646 = vadd.f32 %v588, %v645
  %v647 = vpop.f32.mrf.mxu0
  %v648 = vadd.f32 %v588, %v647
  %649 = vmatmul.bf16.gmra.mxu0 %v624
  %v650 = vpop.f32.mrf.mxu0
  %v651 = vadd.f32 %v588, %v650
  %v652 = vpop.f32.mrf.mxu0
  %v653 = vadd.f32 %v588, %v652
  %654 = vdwg.mxu0
  %s655 = scalar_lea.vmem %s2, 16
  %v656 = vld [vmem:[%s655] sm:$0xf]
  %v657 = vld [vmem:[%s655 + $0x4] sm:$0xf]
  %v658 = vld [vmem:[%s655 + $0x8] sm:$0xf]
  %v659 = vld [vmem:[%s655 + $0xc] sm:$0xf]
  %v664 = vunpack.c.l.b16 %v656
  %v665 = vunpack.c.l.b16 %v657
  %v666 = vunpack.c.l.b16 %v658
  %v667 = vunpack.c.l.b16 %v659
  %v668 = vpack.c.b16 %v665, %v664
  %v669 = vpack.c.b16 %v667, %v666
  %672 = vmatpush.bf16.msra.mxu0 0
  %673 = vmatpush.bf16.msra.mxu0 0
  %674 = vmatpush.bf16.msra.mxu0 0
  %675 = vmatpush.bf16.msra.mxu0 0
  %676 = vmatpush.bf16.msra.mxu0 0
  %677 = vmatpush.bf16.msra.mxu0 0
  %678 = vmatpush.bf16.msra.mxu0 %v669
  %679 = vmatpush.bf16.msra.mxu0 %v668
  %680 = vmatmul.bf16.gmra.mxu0 %v117
  %v681 = vpop.f32.mrf.mxu0
  %v682 = vadd.f32 0.0, %v681
  %v683 = vpop.f32.mrf.mxu0
  %684 = vdwg.mxu0
  %v685 = vadd.f32 %v636, %v682
  %v686 = vxor.u32 %v685, 2147483648
  %v687 = vmul.f32 %v686, 1.442695
  %v688 = vpow.pop %v687
  %v689 = vadd.f32 %v688, 1.0
  %v690 = vrcp.pop %v689
  %v691 = vmul.f32 %v689, %v690
  %v692 = vsub.f32 1.0, %v691
  %v693 = vmul.f32 %v690, %v692
  %v694 = vadd.f32 %v690, %v693
  %vm695 = vweird.f32 %v689
  %vm696 = vweird.f32 %v690
  %vm697 = vmor %vm695, %vm696
  %v698 = vsel %vm697, %v690, %v694
  %v699 = vand.u32 2147483647, %v689
  %vm700 = vcmp.eq.f32.partialorder %v699, 8.507059e+37
  %v701 = vand.u32 %v689, 2147483648
  %v702 = vor.u32 1.1754944e-38, %v701
  %v703 = vsel %vm700, %v702, %v698
  %v704 = vmul.f32 1.0, %v703
  %v705 = vtanh.pop %v685
  %v706 = vmul.f32 %v704, 0.0
  %708 = vrot.lane.b32.xlu0 %v705, 64
  %v709 = vpop.permute.xlu0 %708
  %v711 = vmul.f32 %v704, %v709
  %713 = vrot.lane.b32.xlu0 %v711, 32
  %v714 = vpop.permute.xlu0 %713
  %v716 = vadd.f32 %v706, %v714
  %v717 = vtanh.pop %v716
  %719 = vrot.lane.b32.xlu0 %v717, 64
  %v720 = vpop.permute.xlu0 %719
  %v722 = vmul.f32 %v704, %v720
  %v723 = vpack.c.bf16 %v722, %v722
  %725 = vrot.lane.b32.xlu0 %v723, 32
  %v726 = vpop.permute.xlu0 %725
  %v728 = vsel %vm58, %v726, 0
  %730 = vmatpush.bf16.msra.mxu0 0
  %731 = vmatpush.bf16.msra.mxu0 0
  %732 = vmatpush.bf16.msra.mxu0 0
  %733 = vmatpush.bf16.msra.mxu0 0
  %734 = vmatpush.bf16.msra.mxu0 0
  %735 = vmatpush.bf16.msra.mxu0 0
  %736 = vmatpush.bf16.msra.mxu0 %v669
  %737 = vmatpush.bf16.msra.mxu0 %v668
  %738 = vmatmul.bf16.gmra.mxu0 %v728
  %v739 = vpop.f32.mrf.mxu0
  %v740 = vadd.f32 0.0, %v739
  %v741 = vpop.f32.mrf.mxu0
  %742 = vdwg.mxu0
  %v743 = vadd.f32 %v638, %v740
  %v744 = vxor.u32 %v743, 2147483648
  %v745 = vmul.f32 %v744, 1.442695
  %v746 = vpow.pop %v745
  %v747 = vadd.f32 %v746, 1.0
  %v748 = vrcp.pop %v747
  %v749 = vmul.f32 %v747, %v748
  %v750 = vsub.f32 1.0, %v749
  %v751 = vmul.f32 %v748, %v750
  %v752 = vadd.f32 %v748, %v751
  %vm753 = vweird.f32 %v747
  %vm754 = vweird.f32 %v748
  %vm755 = vmor %vm753, %vm754
  %v756 = vsel %vm755, %v748, %v752
  %v757 = vand.u32 2147483647, %v747
  %vm758 = vcmp.eq.f32.partialorder %v757, 8.507059e+37
  %v759 = vand.u32 %v747, 2147483648
  %v760 = vor.u32 1.1754944e-38, %v759
  %v761 = vsel %vm758, %v760, %v756
  %v762 = vmul.f32 1.0, %v761
  %v763 = vtanh.pop %v743
  %v764 = vmul.f32 %v762, %v716
  %766 = vrot.lane.b32.xlu0 %v763, 64
  %v767 = vpop.permute.xlu0 %766
  %v769 = vmul.f32 %v762, %v767
  %771 = vrot.lane.b32.xlu0 %v769, 32
  %v772 = vpop.permute.xlu0 %771
  %v774 = vadd.f32 %v764, %v772
  %v775 = vtanh.pop %v774
  %777 = vrot.lane.b32.xlu0 %v775, 64
  %v778 = vpop.permute.xlu0 %777
  %v780 = vmul.f32 %v762, %v778
  %v781 = vpack.c.bf16 %v780, %v780
  %783 = vrot.lane.b32.xlu0 %v781, 32
  %v784 = vpop.permute.xlu0 %783
  %v786 = vsel %vm58, %v784, 0
  %788 = vmatpush.bf16.msra.mxu0 0
  %789 = vmatpush.bf16.msra.mxu0 0
  %790 = vmatpush.bf16.msra.mxu0 0
  %791 = vmatpush.bf16.msra.mxu0 0
  %792 = vmatpush.bf16.msra.mxu0 0
  %793 = vmatpush.bf16.msra.mxu0 0
  %794 = vmatpush.bf16.msra.mxu0 %v669
  %795 = vmatpush.bf16.msra.mxu0 %v668
  %796 = vmatmul.bf16.gmra.mxu0 %v786
  %v797 = vpop.f32.mrf.mxu0
  %v798 = vadd.f32 0.0, %v797
  %v799 = vpop.f32.mrf.mxu0
  %800 = vdwg.mxu0
  %v801 = vadd.f32 %v641, %v798
  %v802 = vxor.u32 %v801, 2147483648
  %v803 = vmul.f32 %v802, 1.442695
  %v804 = vpow.pop %v803
  %v805 = vadd.f32 %v804, 1.0
  %v806 = vrcp.pop %v805
  %v807 = vmul.f32 %v805, %v806
  %v808 = vsub.f32 1.0, %v807
  %v809 = vmul.f32 %v806, %v808
  %v810 = vadd.f32 %v806, %v809
  %vm811 = vweird.f32 %v805
  %vm812 = vweird.f32 %v806
  %vm813 = vmor %vm811, %vm812
  %v814 = vsel %vm813, %v806, %v810
  %v815 = vand.u32 2147483647, %v805
  %vm816 = vcmp.eq.f32.partialorder %v815, 8.507059e+37
  %v817 = vand.u32 %v805, 2147483648
  %v818 = vor.u32 1.1754944e-38, %v817
  %v819 = vsel %vm816, %v818, %v814
  %v820 = vmul.f32 1.0, %v819
  %v821 = vtanh.pop %v801
  %v822 = vmul.f32 %v820, %v774
  %824 = vrot.lane.b32.xlu0 %v821, 64
  %v825 = vpop.permute.xlu0 %824
  %v827 = vmul.f32 %v820, %v825
  %829 = vrot.lane.b32.xlu0 %v827, 32
  %v830 = vpop.permute.xlu0 %829
  %v832 = vadd.f32 %v822, %v830
  %v833 = vtanh.pop %v832
  %835 = vrot.lane.b32.xlu0 %v833, 64
  %v836 = vpop.permute.xlu0 %835
  %v838 = vmul.f32 %v820, %v836
  %v839 = vpack.c.bf16 %v838, %v838
  %841 = vrot.lane.b32.xlu0 %v839, 32
  %v842 = vpop.permute.xlu0 %841
  %v844 = vsel %vm58, %v842, 0
  %846 = vmatpush.bf16.msra.mxu0 0
  %847 = vmatpush.bf16.msra.mxu0 0
  %848 = vmatpush.bf16.msra.mxu0 0
  %849 = vmatpush.bf16.msra.mxu0 0
  %850 = vmatpush.bf16.msra.mxu0 0
  %851 = vmatpush.bf16.msra.mxu0 0
  %852 = vmatpush.bf16.msra.mxu0 %v669
  %853 = vmatpush.bf16.msra.mxu0 %v668
  %854 = vmatmul.bf16.gmra.mxu0 %v844
  %v855 = vpop.f32.mrf.mxu0
  %v856 = vadd.f32 0.0, %v855
  %v857 = vpop.f32.mrf.mxu0
  %858 = vdwg.mxu0
  %v859 = vadd.f32 %v643, %v856
  %v860 = vxor.u32 %v859, 2147483648
  %v861 = vmul.f32 %v860, 1.442695
  %v862 = vpow.pop %v861
  %v863 = vadd.f32 %v862, 1.0
  %v864 = vrcp.pop %v863
  %v865 = vmul.f32 %v863, %v864
  %v866 = vsub.f32 1.0, %v865
  %v867 = vmul.f32 %v864, %v866
  %v868 = vadd.f32 %v864, %v867
  %vm869 = vweird.f32 %v863
  %vm870 = vweird.f32 %v864
  %vm871 = vmor %vm869, %vm870
  %v872 = vsel %vm871, %v864, %v868
  %v873 = vand.u32 2147483647, %v863
  %vm874 = vcmp.eq.f32.partialorder %v873, 8.507059e+37
  %v875 = vand.u32 %v863, 2147483648
  %v876 = vor.u32 1.1754944e-38, %v875
  %v877 = vsel %vm874, %v876, %v872
  %v878 = vmul.f32 1.0, %v877
  %v879 = vtanh.pop %v859
  %v880 = vmul.f32 %v878, %v832
  %882 = vrot.lane.b32.xlu0 %v879, 64
  %v883 = vpop.permute.xlu0 %882
  %v885 = vmul.f32 %v878, %v883
  %887 = vrot.lane.b32.xlu0 %v885, 32
  %v888 = vpop.permute.xlu0 %887
  %v890 = vadd.f32 %v880, %v888
  %v891 = vtanh.pop %v890
  %893 = vrot.lane.b32.xlu0 %v891, 64
  %v894 = vpop.permute.xlu0 %893
  %v896 = vmul.f32 %v878, %v894
  %v897 = vpack.c.bf16 %v896, %v896
  %899 = vrot.lane.b32.xlu0 %v897, 32
  %v900 = vpop.permute.xlu0 %899
  %v902 = vsel %vm58, %v900, 0
  %904 = vmatpush.bf16.msra.mxu0 0
  %905 = vmatpush.bf16.msra.mxu0 0
  %906 = vmatpush.bf16.msra.mxu0 0
  %907 = vmatpush.bf16.msra.mxu0 0
  %908 = vmatpush.bf16.msra.mxu0 0
  %909 = vmatpush.bf16.msra.mxu0 0
  %910 = vmatpush.bf16.msra.mxu0 %v669
  %911 = vmatpush.bf16.msra.mxu0 %v668
  %912 = vmatmul.bf16.gmra.mxu0 %v902
  %v913 = vpop.f32.mrf.mxu0
  %v914 = vadd.f32 0.0, %v913
  %v915 = vpop.f32.mrf.mxu0
  %916 = vdwg.mxu0
  %v917 = vadd.f32 %v646, %v914
  %v918 = vxor.u32 %v917, 2147483648
  %v919 = vmul.f32 %v918, 1.442695
  %v920 = vpow.pop %v919
  %v921 = vadd.f32 %v920, 1.0
  %v922 = vrcp.pop %v921
  %v923 = vmul.f32 %v921, %v922
  %v924 = vsub.f32 1.0, %v923
  %v925 = vmul.f32 %v922, %v924
  %v926 = vadd.f32 %v922, %v925
  %vm927 = vweird.f32 %v921
  %vm928 = vweird.f32 %v922
  %vm929 = vmor %vm927, %vm928
  %v930 = vsel %vm929, %v922, %v926
  %v931 = vand.u32 2147483647, %v921
  %vm932 = vcmp.eq.f32.partialorder %v931, 8.507059e+37
  %v933 = vand.u32 %v921, 2147483648
  %v934 = vor.u32 1.1754944e-38, %v933
  %v935 = vsel %vm932, %v934, %v930
  %v936 = vmul.f32 1.0, %v935
  %v937 = vtanh.pop %v917
  %v938 = vmul.f32 %v936, %v890
  %940 = vrot.lane.b32.xlu0 %v937, 64
  %v941 = vpop.permute.xlu0 %940
  %v943 = vmul.f32 %v936, %v941
  %945 = vrot.lane.b32.xlu0 %v943, 32
  %v946 = vpop.permute.xlu0 %945
  %v948 = vadd.f32 %v938, %v946
  %v949 = vtanh.pop %v948
  %951 = vrot.lane.b32.xlu0 %v949, 64
  %v952 = vpop.permute.xlu0 %951
  %v954 = vmul.f32 %v936, %v952
  %v955 = vpack.c.bf16 %v954, %v954
  %957 = vrot.lane.b32.xlu0 %v955, 32
  %v958 = vpop.permute.xlu0 %957
  %v960 = vsel %vm58, %v958, 0
  %962 = vmatpush.bf16.msra.mxu0 0
  %963 = vmatpush.bf16.msra.mxu0 0
  %964 = vmatpush.bf16.msra.mxu0 0
  %965 = vmatpush.bf16.msra.mxu0 0
  %966 = vmatpush.bf16.msra.mxu0 0
  %967 = vmatpush.bf16.msra.mxu0 0
  %968 = vmatpush.bf16.msra.mxu0 %v669
  %969 = vmatpush.bf16.msra.mxu0 %v668
  %970 = vmatmul.bf16.gmra.mxu0 %v960
  %v971 = vpop.f32.mrf.mxu0
  %v972 = vadd.f32 0.0, %v971
  %v973 = vpop.f32.mrf.mxu0
  %974 = vdwg.mxu0
  %v975 = vadd.f32 %v648, %v972
  %v976 = vxor.u32 %v975, 2147483648
  %v977 = vmul.f32 %v976, 1.442695
  %v978 = vpow.pop %v977
  %v979 = vadd.f32 %v978, 1.0
  %v980 = vrcp.pop %v979
  %v981 = vmul.f32 %v979, %v980
  %v982 = vsub.f32 1.0, %v981
  %v983 = vmul.f32 %v980, %v982
  %v984 = vadd.f32 %v980, %v983
  %vm985 = vweird.f32 %v979
  %vm986 = vweird.f32 %v980
  %vm987 = vmor %vm985, %vm986
  %v988 = vsel %vm987, %v980, %v984
  %v989 = vand.u32 2147483647, %v979
  %vm990 = vcmp.eq.f32.partialorder %v989, 8.507059e+37
  %v991 = vand.u32 %v979, 2147483648
  %v992 = vor.u32 1.1754944e-38, %v991
  %v993 = vsel %vm990, %v992, %v988
  %v994 = vmul.f32 1.0, %v993
  %v995 = vtanh.pop %v975
  %v996 = vmul.f32 %v994, %v948
  %998 = vrot.lane.b32.xlu0 %v995, 64
  %v999 = vpop.permute.xlu0 %998
  %v1001 = vmul.f32 %v994, %v999
  %1003 = vrot.lane.b32.xlu0 %v1001, 32
  %v1004 = vpop.permute.xlu0 %1003
  %v1006 = vadd.f32 %v996, %v1004
  %v1007 = vtanh.pop %v1006
  %1009 = vrot.lane.b32.xlu0 %v1007, 64
  %v1010 = vpop.permute.xlu0 %1009
  %v1012 = vmul.f32 %v994, %v1010
  %v1013 = vpack.c.bf16 %v1012, %v1012
  %1015 = vrot.lane.b32.xlu0 %v1013, 32
  %v1016 = vpop.permute.xlu0 %1015
  %v1018 = vsel %vm58, %v1016, 0
  %1020 = vmatpush.bf16.msra.mxu0 0
  %1021 = vmatpush.bf16.msra.mxu0 0
  %1022 = vmatpush.bf16.msra.mxu0 0
  %1023 = vmatpush.bf16.msra.mxu0 0
  %1024 = vmatpush.bf16.msra.mxu0 0
  %1025 = vmatpush.bf16.msra.mxu0 0
  %1026 = vmatpush.bf16.msra.mxu0 %v669
  %1027 = vmatpush.bf16.msra.mxu0 %v668
  %1028 = vmatmul.bf16.gmra.mxu0 %v1018
  %v1029 = vpop.f32.mrf.mxu0
  %v1030 = vadd.f32 0.0, %v1029
  %v1031 = vpop.f32.mrf.mxu0
  %1032 = vdwg.mxu0
  %v1033 = vadd.f32 %v651, %v1030
  %v1034 = vxor.u32 %v1033, 2147483648
  %v1035 = vmul.f32 %v1034, 1.442695
  %v1036 = vpow.pop %v1035
  %v1037 = vadd.f32 %v1036, 1.0
  %v1038 = vrcp.pop %v1037
  %v1039 = vmul.f32 %v1037, %v1038
  %v1040 = vsub.f32 1.0, %v1039
  %v1041 = vmul.f32 %v1038, %v1040
  %v1042 = vadd.f32 %v1038, %v1041
  %vm1043 = vweird.f32 %v1037
  %vm1044 = vweird.f32 %v1038
  %vm1045 = vmor %vm1043, %vm1044
  %v1046 = vsel %vm1045, %v1038, %v1042
  %v1047 = vand.u32 2147483647, %v1037
  %vm1048 = vcmp.eq.f32.partialorder %v1047, 8.507059e+37
  %v1049 = vand.u32 %v1037, 2147483648
  %v1050 = vor.u32 1.1754944e-38, %v1049
  %v1051 = vsel %vm1048, %v1050, %v1046
  %v1052 = vmul.f32 1.0, %v1051
  %v1053 = vtanh.pop %v1033
  %v1054 = vmul.f32 %v1052, %v1006
  %1056 = vrot.lane.b32.xlu0 %v1053, 64
  %v1057 = vpop.permute.xlu0 %1056
  %v1059 = vmul.f32 %v1052, %v1057
  %1061 = vrot.lane.b32.xlu0 %v1059, 32
  %v1062 = vpop.permute.xlu0 %1061
  %v1064 = vadd.f32 %v1054, %v1062
  %v1065 = vtanh.pop %v1064
  %1067 = vrot.lane.b32.xlu0 %v1065, 64
  %v1068 = vpop.permute.xlu0 %1067
  %v1070 = vmul.f32 %v1052, %v1068
  %v1071 = vpack.c.bf16 %v1070, %v1070
  %1073 = vrot.lane.b32.xlu0 %v1071, 32
  %v1074 = vpop.permute.xlu0 %1073
  %v1076 = vsel %vm58, %v1074, 0
  %1078 = vmatpush.bf16.msra.mxu0 0
  %1079 = vmatpush.bf16.msra.mxu0 0
  %1080 = vmatpush.bf16.msra.mxu0 0
  %1081 = vmatpush.bf16.msra.mxu0 0
  %1082 = vmatpush.bf16.msra.mxu0 0
  %1083 = vmatpush.bf16.msra.mxu0 0
  %1084 = vmatpush.bf16.msra.mxu0 %v669
  %1085 = vmatpush.bf16.msra.mxu0 %v668
  %1086 = vmatmul.bf16.gmra.mxu0 %v1076
  %v1087 = vpop.f32.mrf.mxu0
  %v1088 = vadd.f32 0.0, %v1087
  %v1089 = vpop.f32.mrf.mxu0
  %1090 = vdwg.mxu0
  %v1091 = vadd.f32 %v653, %v1088
  %v1092 = vxor.u32 %v1091, 2147483648
  %v1093 = vmul.f32 %v1092, 1.442695
  %v1094 = vpow.pop %v1093
  %v1095 = vadd.f32 %v1094, 1.0
  %v1096 = vrcp.pop %v1095
  %v1097 = vmul.f32 %v1095, %v1096
  %v1098 = vsub.f32 1.0, %v1097
  %v1099 = vmul.f32 %v1096, %v1098
  %v1100 = vadd.f32 %v1096, %v1099
  %vm1101 = vweird.f32 %v1095
  %vm1102 = vweird.f32 %v1096
  %vm1103 = vmor %vm1101, %vm1102
  %v1104 = vsel %vm1103, %v1096, %v1100
  %v1105 = vand.u32 2147483647, %v1095
  %vm1106 = vcmp.eq.f32.partialorder %v1105, 8.507059e+37
  %v1107 = vand.u32 %v1095, 2147483648
  %v1108 = vor.u32 1.1754944e-38, %v1107
  %v1109 = vsel %vm1106, %v1108, %v1104
  %v1110 = vmul.f32 1.0, %v1109
  %v1111 = vtanh.pop %v1091
  %v1112 = vmul.f32 %v1110, %v1064
  %1114 = vrot.lane.b32.xlu0 %v1111, 64
  %v1115 = vpop.permute.xlu0 %1114
  %v1117 = vmul.f32 %v1110, %v1115
  %1119 = vrot.lane.b32.xlu0 %v1117, 32
  %v1120 = vpop.permute.xlu0 %1119
  %v1122 = vadd.f32 %v1112, %v1120
  %v1123 = vtanh.pop %v1122
  %1125 = vrot.lane.b32.xlu0 %v1123, 64
  %v1126 = vpop.permute.xlu0 %1125
  %v1128 = vmul.f32 %v1110, %v1126
  %v1129 = vmax.f32 %v722, 0.0
  %v1130 = vmax.f32 %v780, 0.0
  %v1131 = vmax.f32 %v838, 0.0
  %v1132 = vmax.f32 %v896, 0.0
  %v1133 = vmax.f32 %v954, 0.0
  %v1134 = vmax.f32 %v1012, 0.0
  %v1135 = vmax.f32 %v1070, 0.0
  %v1136 = vmax.f32 %v1128, 0.0
  %1145 = vrot.lane.b32.xlu0 %v1129, 32
  %v1146 = vpop.permute.xlu0 %1145
  %1147 = vrot.lane.b32.xlu0 %v1130, 32
  %v1148 = vpop.permute.xlu0 %1147
  %1149 = vrot.lane.b32.xlu0 %v1131, 32
  %v1150 = vpop.permute.xlu0 %1149
  %1151 = vrot.lane.b32.xlu0 %v1132, 32
  %v1152 = vpop.permute.xlu0 %1151
  %1153 = vrot.lane.b32.xlu0 %v1133, 32
  %v1154 = vpop.permute.xlu0 %1153
  %1155 = vrot.lane.b32.xlu0 %v1134, 32
  %v1156 = vpop.permute.xlu0 %1155
  %1157 = vrot.lane.b32.xlu0 %v1135, 32
  %v1158 = vpop.permute.xlu0 %1157
  %1159 = vrot.lane.b32.xlu0 %v1136, 32
  %v1160 = vpop.permute.xlu0 %1159
  %1169 = vst.msk [vmem:[%s6] sm:$0xff] %vm58, %v1146
  %1170 = vst.msk [vmem:[%s6 + $0x8] sm:$0xff] %vm58, %v1148
  %1171 = vst.msk [vmem:[%s6 + $0x10] sm:$0xff] %vm58, %v1150
  %1172 = vst.msk [vmem:[%s6 + $0x18] sm:$0xff] %vm58, %v1152
  %1173 = vst.msk [vmem:[%s6 + $0x20] sm:$0xff] %vm58, %v1154
  %1174 = vst.msk [vmem:[%s6 + $0x28] sm:$0xff] %vm58, %v1156
  %1175 = vst.msk [vmem:[%s6 + $0x30] sm:$0xff] %vm58, %v1158
  %1176 = vst.msk [vmem:[%s6 + $0x38] sm:$0xff] %vm58, %v1160
  %v1177 = vpack.c.bf16 %v1130, %v1129
  %v1178 = vpack.c.bf16 %v1132, %v1131
  %v1179 = vpack.c.bf16 %v1134, %v1133
  %v1180 = vpack.c.bf16 %v1136, %v1135
  %v1181 = vld [vmem:[%s4] sm:$0xf]
  %v1182 = vld [vmem:[%s4 + $0x4] sm:$0xf]
  %v1183 = vld [vmem:[%s4 + $0x8] sm:$0xf]
  %v1184 = vld [vmem:[%s4 + $0xc] sm:$0xf]
  %v1185 = vld [vmem:[%s5] sm:$0x1]
  %v1187 = vperm.slane %v1185, 0
  %1193 = vrot.lane.b32.xlu0 %v1177, 32
  %v1194 = vpop.permute.xlu0 %1193
  %1195 = vrot.lane.b32.xlu0 %v1178, 32
  %v1196 = vpop.permute.xlu0 %1195
  %1197 = vrot.lane.b32.xlu0 %v1179, 32
  %v1198 = vpop.permute.xlu0 %1197
  %1199 = vrot.lane.b32.xlu0 %v1180, 32
  %v1200 = vpop.permute.xlu0 %1199
  %v1205 = vunpack.c.l.b16 %v1181
  %v1206 = vunpack.c.l.b16 %v1182
  %v1207 = vunpack.c.l.b16 %v1183
  %v1208 = vunpack.c.l.b16 %v1184
  %v1209 = vpack.c.b16 %v1206, %v1205
  %v1210 = vpack.c.b16 %v1208, %v1207
  %v1214 = vsel %vm58, %v1194, 0
  %v1217 = vsel %vm58, %v1196, 0
  %v1220 = vsel %vm58, %v1198, 0
  %v1223 = vsel %vm58, %v1200, 0
  %1225 = vmatpush.bf16.msra.mxu0 0
  %1226 = vmatpush.bf16.msra.mxu0 0
  %1227 = vmatpush.bf16.msra.mxu0 0
  %1228 = vmatpush.bf16.msra.mxu0 0
  %1229 = vmatpush.bf16.msra.mxu0 0
  %1230 = vmatpush.bf16.msra.mxu0 0
  %1231 = vmatpush.bf16.msra.mxu0 %v1210
  %1232 = vmatpush.bf16.msra.mxu0 %v1209
  %1233 = vmatmul.bf16.gmra.mxu0 %v1214
  %v1234 = vpop.f32.mrf.mxu0
  %v1235 = vadd.f32 %v1187, %v1234
  %v1236 = vpop.f32.mrf.mxu0
  %v1237 = vadd.f32 %v1187, %v1236
  %1238 = vmatmul.bf16.gmra.mxu0 %v1217
  %v1239 = vpop.f32.mrf.mxu0
  %v1240 = vadd.f32 %v1187, %v1239
  %v1241 = vpop.f32.mrf.mxu0
  %v1242 = vadd.f32 %v1187, %v1241
  %1243 = vmatmul.bf16.gmra.mxu0 %v1220
  %v1244 = vpop.f32.mrf.mxu0
  %v1245 = vadd.f32 %v1187, %v1244
  %v1246 = vpop.f32.mrf.mxu0
  %v1247 = vadd.f32 %v1187, %v1246
  %1248 = vmatmul.bf16.gmra.mxu0 %v1223
  %v1249 = vpop.f32.mrf.mxu0
  %v1250 = vadd.f32 %v1187, %v1249
  %v1251 = vpop.f32.mrf.mxu0
  %v1252 = vadd.f32 %v1187, %v1251
  %1253 = vdwg.mxu0
  %v1254 = vmax.f32 %v1235, 0.0
  %v1255 = vmax.f32 %v1237, 0.0
  %v1256 = vmax.f32 %v1240, 0.0
  %v1257 = vmax.f32 %v1242, 0.0
  %v1258 = vmax.f32 %v1245, 0.0
  %v1259 = vmax.f32 %v1247, 0.0
  %v1260 = vmax.f32 %v1250, 0.0
  %v1261 = vmax.f32 %v1252, 0.0
  %1262 = vst.msk [vmem:[%s7] sm:$0xff] %vm58, %v1254
  %1263 = vst.msk [vmem:[%s7 + $0x8] sm:$0xff] %vm58, %v1255
  %1264 = vst.msk [vmem:[%s7 + $0x10] sm:$0xff] %vm58, %v1256
  %1265 = vst.msk [vmem:[%s7 + $0x18] sm:$0xff] %vm58, %v1257
  %1266 = vst.msk [vmem:[%s7 + $0x20] sm:$0xff] %vm58, %v1258
  %1267 = vst.msk [vmem:[%s7 + $0x28] sm:$0xff] %vm58, %v1259
  %1268 = vst.msk [vmem:[%s7 + $0x30] sm:$0xff] %vm58, %v1260
  %1269 = vst.msk [vmem:[%s7 + $0x38] sm:$0xff] %vm58, %v1261
  // Predicated region
  $region26: #{bt_network_forward.1} parent=0 // pred_check
    _
  $region27: #{bt_network_forward.1} parent=0 // pred_check_branch
    %1271 = sbr.rel (0) target = $region29
  $region28: #{bt_network_forward.1} parent=0 // pred_region
    _
  $region29: #{bt_network_forward.1} parent=0 // pred_fallthru
    _
  // Predicated region
  $region30: #{bt_network_forward.1} parent=0 // pred_check
    _
  $region31: #{bt_network_forward.1} parent=0 // pred_check_branch
    %1273 = sbr.rel (0) target = $region33
  $region32: #{bt_network_forward.1} parent=0 // pred_region
    _
  $region33: #{bt_network_forward.1} parent=0 // pred_fallthru
    _
  // Predicated region
  $region34: #{bt_network_forward.1} parent=0 // pred_check
    _
  $region35: #{bt_network_forward.1} parent=0 // pred_check_branch
    %1275 = sbr.rel (0) target = $region37
  $region36: #{bt_network_forward.1} parent=0 // pred_region
    _
  $region37: #{bt_network_forward.1} parent=0 // pred_fallthru
    _
  // Predicated region
  $region38: #{bt_network_forward.1} parent=0 // pred_check
    _
  $region39: #{bt_network_forward.1} parent=0 // pred_check_branch
    %1277 = sbr.rel (0) target = $region41
  $region40: #{bt_network_forward.1} parent=0 // pred_region
    _
  $region41: #{bt_network_forward.1} parent=0 // pred_fallthru
    _

</llo_original>
